<compile_context>
chip_gen: v7x
topology: tpu7x:2x2x1
jax: 0.10.0
libtpu: 0.0.40
codegen_flags: <defaults>
</compile_context>

<pallas_src>
import functools
import math

import jax
import jax.numpy as jnp
from jax import lax
from jax.experimental import pallas as pl
from jax.experimental.pallas import tpu as pltpu


# ----------------------------------------------------------------------------
# Tiling / hardware helpers
# ----------------------------------------------------------------------------
def _tile(dim, pref, align):
    """Largest multiple of `align` that divides `dim` and is <= pref, else full dim."""
    if dim <= pref:
        return dim
    t = (pref // align) * align
    while t >= align:
        if dim % t == 0:
            return t
        t -= align
    return dim


def _heads_per_block(n_head, head_size):
    """Smallest head group whose packed width is a multiple of 128 lanes (else all heads)."""
    for h in range(1, n_head + 1):
        if n_head % h == 0 and (h * head_size) % 128 == 0:
            return h
    return n_head


@functools.lru_cache(maxsize=None)
def _vmem_limit_bytes():
    """~75% of physical VMEM, capped at 96 MiB (v5e/v6e: 96 MiB, v7x: 48 MiB)."""
    try:
        info = pltpu.get_tpu_info()
        cap = int(getattr(info, "vmem_capacity_bytes", 0) or 0)
        if cap > 0:
            return int(min(96 * 1024 * 1024, cap * 3 // 4))
    except Exception:
        pass
    return 48 * 1024 * 1024


# ----------------------------------------------------------------------------
# Kernels
# ----------------------------------------------------------------------------
def _linear_kernel(x_ref, w_ref, b_ref, o_ref):
    """o = x @ w + b for one (row-tile, split, col-tile) block.

    x_ref: (tm, Cin) bf16   w_ref: (Cin, tn) bf16   b_ref: (1, tn) f32   o_ref: (tm, tn)
    """
    acc = jnp.dot(x_ref[...], w_ref[...], preferred_element_type=jnp.float32)
    o_ref[...] = (acc + b_ref[...]).astype(o_ref.dtype)


def _online_softmax_update(q_heads, k_blk, v_blk, ms, ls, accs, *, bias, hs, bf16_exp):
    """One flash-attention update for all heads in the block.

    q_heads: list of (tq, hs) bf16 (scale pre-folded into the Q weights)
    k_blk / v_blk: (t_kv, hd) bf16 tiles of the resident K/V panel
    ms/ls: tuples of (tq, 1) f32   accs: tuple of (tq, hs) f32
    bias: None (fully-visible tile) or (tq, t_kv) f32 additive causal bias
    """
    new_ms, new_ls, new_accs = [], [], []
    for h, (q_h, m, l, acc) in enumerate(zip(q_heads, ms, ls, accs)):
        sl = slice(h * hs, (h + 1) * hs)
        k_h = k_blk[:, sl]                               # (t_kv, hs) bf16
        v_h = v_blk[:, sl]

        # QK^T contracting the shared head dim (no transposed copy of k).
        s = lax.dot_general(q_h, k_h, (((1,), (1,)), ((), ())),
                            preferred_element_type=jnp.float32)
        if bias is not None:                             # diagonal tiles only
            s = s + bias

        m_new = jnp.maximum(m, jnp.max(s, axis=-1, keepdims=True))
        alpha = jnp.exp(m - m_new)
        if bf16_exp:
            # v6e/v7x: bf16 EUP exp + bf16 p straight into the PV matmul.
            p = jnp.exp((s - m_new).astype(jnp.bfloat16))
            l_new = alpha * l + jnp.sum(p, axis=-1, keepdims=True, dtype=jnp.float32)
            pv = jnp.dot(p, v_h, preferred_element_type=jnp.float32)
        else:
            p = jnp.exp(s - m_new)
            l_new = alpha * l + jnp.sum(p, axis=-1, keepdims=True)
            pv = jnp.dot(p.astype(v_h.dtype), v_h, preferred_element_type=jnp.float32)

        new_ms.append(m_new)
        new_ls.append(l_new)
        new_accs.append(alpha * acc + pv)
    return tuple(new_ms), tuple(new_ls), tuple(new_accs)


def _flash_attn_kernel(q_ref, k_ref, v_ref, o_ref, *, hpb, hs, t_kv, bf16_exp):
    """Causal flash attention for one (batch, head-block, q-tile).

    q_ref: (tq, hd) bf16      k_ref / v_ref: (T, hd) bf16 (resident per (b, head-block))
    o_ref: (tq, hd) bf16      hd = hpb * hs
    The kv walk is triangular: qi*r fully-visible tiles (no mask) + r diagonal tiles
    (static local mask).  No dead grid steps, no cross-step accumulators.
    """
    qi = pl.program_id(2)
    tq = q_ref.shape[0]
    r = tq // t_kv                                       # diagonal kv sub-tiles per q tile

    # Per-head q slices, loaded once per grid step (attention scale folded into weights).
    q_all = q_ref[...]                                   # (tq, hd) bf16
    q_heads = [q_all[:, h * hs:(h + 1) * hs] for h in range(hpb)]

    # Static causal biases for the r diagonal kv sub-tiles (independent of qi).
    row = lax.broadcasted_iota(jnp.int32, (tq, t_kv), 0)
    col = lax.broadcasted_iota(jnp.int32, (tq, t_kv), 1)
    biases = [jnp.where(col + j * t_kv <= row, 0.0, -1e30).astype(jnp.float32)
              for j in range(r)]

    ms = tuple(jnp.full((tq, 1), -jnp.inf, jnp.float32) for _ in range(hpb))
    ls = tuple(jnp.zeros((tq, 1), jnp.float32) for _ in range(hpb))
    accs = tuple(jnp.zeros((tq, hs), jnp.float32) for _ in range(hpb))

    # Phase 1: strictly-lower kv tiles — fully visible, mask-free fast path.
    def body(kv, carry):
        ms, ls, accs = carry
        start = pl.multiple_of(kv * t_kv, t_kv)
        k_blk = k_ref[pl.ds(start, t_kv), :]
        v_blk = v_ref[pl.ds(start, t_kv), :]
        return _online_softmax_update(q_heads, k_blk, v_blk, ms, ls, accs,
                                      bias=None, hs=hs, bf16_exp=bf16_exp)

    ms, ls, accs = lax.fori_loop(0, qi * r, body, (ms, ls, accs))

    # Phase 2: the r diagonal kv tiles — static local causal bias.
    for j in range(r):
        start = pl.multiple_of(qi * tq + j * t_kv, t_kv)
        k_blk = k_ref[pl.ds(start, t_kv), :]
        v_blk = v_ref[pl.ds(start, t_kv), :]
        ms, ls, accs = _online_softmax_update(q_heads, k_blk, v_blk, ms, ls, accs,
                                              bias=biases[j], hs=hs, bf16_exp=bf16_exp)

    # Finalize: normalize per head and write ONE lane-dense output tile.
    outs = [accs[h] * pl.reciprocal(ls[h], approx=True) for h in range(hpb)]
    out_tile = outs[0] if hpb == 1 else jnp.concatenate(outs, axis=-1)   # (tq, hd) f32
    o_ref[...] = out_tile.astype(o_ref.dtype)


# ----------------------------------------------------------------------------
# pallas_call wrappers
# ----------------------------------------------------------------------------
def _linear(x2, w, b, *, out_dtype, tm_pref=512, tn_pref=512):
    """x2: (M, Cin) bf16, w: (S, Cin, Co) bf16, b: (S, 1, Co) f32 -> (S, M, Co)."""
    M, Cin = x2.shape
    S, _, Co = w.shape
    tm = _tile(M, tm_pref, 16)      # bf16: 16-sublane alignment
    tn = _tile(Co, tn_pref, 128)
    grid = (M // tm, S, Co // tn)
    return pl.pallas_call(
        _linear_kernel,
        out_shape=jax.ShapeDtypeStruct((S, M, Co), out_dtype),
        grid=grid,
        in_specs=[
            pl.BlockSpec((tm, Cin), lambda mi, s, ci: (mi, 0)),
            pl.BlockSpec((None, Cin, tn), lambda mi, s, ci: (s, 0, ci)),
            pl.BlockSpec((None, 1, tn), lambda mi, s, ci: (s, 0, ci)),
        ],
        out_specs=pl.BlockSpec((None, tm, tn), lambda mi, s, ci: (s, mi, ci)),
        compiler_params=pltpu.CompilerParams(
            dimension_semantics=("parallel", "parallel", "parallel"),
            vmem_limit_bytes=_vmem_limit_bytes(),
        ),
    )(x2, w, b)


def _flash_attention(qkv, n_head, *, t_q_pref=256, t_kv_pref=128, bf16_exp=False):
    """qkv: (3, B, T, C) bf16 -> y: (B, T, C) bf16 (heads packed in the last dim).

    K/V are held resident in VMEM per (batch, head-block): their index maps are constant
    in the q-tile grid axis, so the DMA is elided after the first q tile.
    """
    _, B, T, C = qkv.shape
    hs = C // n_head
    hpb = _heads_per_block(n_head, hs)
    hd = hpb * hs
    n_hblk = n_head // hpb
    tq = _tile(T, t_q_pref, 16)
    t_kv = _tile(tq, t_kv_pref, 16)          # t_kv always divides tq
    n_q = T // tq

    kernel = functools.partial(_flash_attn_kernel, hpb=hpb, hs=hs, t_kv=t_kv,
                               bf16_exp=bf16_exp)

    q_spec = pl.BlockSpec((None, None, tq, hd), lambda b, hb, qi: (0, b, qi, hb))
    k_spec = pl.BlockSpec((None, None, T, hd), lambda b, hb, qi: (1, b, 0, hb))
    v_spec = pl.BlockSpec((None, None, T, hd), lambda b, hb, qi: (2, b, 0, hb))
    o_spec = pl.BlockSpec((None, tq, hd), lambda b, hb, qi: (b, qi, hb))

    # NOTE: resident K/V costs ~ 2 * 2(buffers) * T*hd*2B of VMEM; fine for typical
    # GPT block sizes.  TODO(synk): fall back to streamed K/V tiles for very long T.
    return pl.pallas_call(
        kernel,
        out_shape=jax.ShapeDtypeStruct((B, T, C), jnp.bfloat16),
        grid=(B, n_hblk, n_q),
        in_specs=[q_spec, k_spec, v_spec],
        out_specs=o_spec,
        compiler_params=pltpu.CompilerParams(
            dimension_semantics=("parallel", "parallel", "parallel"),
            vmem_limit_bytes=_vmem_limit_bytes(),
        ),
    )(qkv, qkv, qkv)


# ----------------------------------------------------------------------------
# Module-equivalent forward
# ----------------------------------------------------------------------------
def prepare_params(params, n_embd, n_head):
    """One-time weight prep: transpose to (Cin, Cout), split the qkv weight into
    (3, C, C), fold the 1/sqrt(head_size) attention scale into the Q plane (weight AND
    bias), cast matmul operands to bf16; biases stay f32."""
    C = n_embd
    scale = 1.0 / math.sqrt(C // n_head)
    w_attn = jnp.transpose(params["w_attn"].T.reshape(C, 3, C), (1, 0, 2))   # (3, Cin, Cout)
    b_attn = params["b_attn"].reshape(3, 1, C).astype(jnp.float32)
    plane_scale = jnp.asarray([scale, 1.0, 1.0], jnp.float32).reshape(3, 1, 1)
    w_attn = w_attn.astype(jnp.float32) * plane_scale
    b_attn = b_attn * plane_scale
    return {
        "w_attn": w_attn.astype(jnp.bfloat16),                                # (3, C, C)
        "b_attn": b_attn,                                                     # (3, 1, C)
        "w_proj": params["w_proj"].T.reshape(1, C, C).astype(jnp.bfloat16),
        "b_proj": params["b_proj"].reshape(1, 1, C).astype(jnp.float32),
    }


def causal_self_attention(x, prepared, n_head, *, t_q_pref=256, t_kv_pref=128,
                          bf16_exp=False):
    """Forward pass equivalent to CausalSelfAttention.forward (eval mode)."""
    B, T, C = x.shape
    xb = x.astype(jnp.bfloat16).reshape(B * T, C)

    # c_attn: the output BlockSpec writes q/k/v as separate (B*T, C) planes directly.
    qkv = _linear(xb, prepared["w_attn"], prepared["b_attn"],
                  out_dtype=jnp.bfloat16)                 # (3, B*T, C)
    qkv = qkv.reshape(3, B, T, C)                         # free reshape

    # Flash attention: heads sliced out of the last dim via BlockSpecs (no transposes).
    y = _flash_attention(qkv, n_head, t_q_pref=t_q_pref, t_kv_pref=t_kv_pref,
                         bf16_exp=bf16_exp)               # (B, T, C) bf16

    # c_proj
    out = _linear(y.reshape(B * T, C), prepared["w_proj"], prepared["b_proj"],
                  out_dtype=jnp.float32)                  # (1, B*T, C)
    return out.reshape(B, T, C)


def init_params(key, n_embd):
    """Deterministic nn.Linear-style init (uniform +/- 1/sqrt(fan_in)), PyTorch layout."""
    k1, k2, k3, k4 = jax.random.split(key, 4)
    bound = 1.0 / math.sqrt(n_embd)
    return {
        "w_attn": jax.random.uniform(k1, (3 * n_embd, n_embd), jnp.float32, -bound, bound),
        "b_attn": jax.random.uniform(k2, (3 * n_embd,), jnp.float32, -bound, bound),
        "w_proj": jax.random.uniform(k3, (n_embd, n_embd), jnp.float32, -bound, bound),
        "b_proj": jax.random.uniform(k4, (n_embd,), jnp.float32, -bound, bound),
    }


def _reference(x, params, n_head):
    """Pure-JAX reference with the same bf16-operand / f32-accumulate policy."""
    B, T, C = x.shape
    hs = C // n_head
    xb = x.astype(jnp.bfloat16)
    w_attn = params["w_attn"].T.astype(jnp.bfloat16)
    w_proj = params["w_proj"].T.astype(jnp.bfloat16)
    qkv = jnp.dot(xb, w_attn, preferred_element_type=jnp.float32) + params["b_attn"]
    qkv = qkv.astype(jnp.bfloat16)
    q, k, v = jnp.split(qkv, 3, axis=2)
    heads = lambda t: t.reshape(B, T, n_head, hs).transpose(0, 2, 1, 3)
    q, k, v = map(heads, (q, k, v))
    att = jnp.einsum("bhqd,bhkd->bhqk", q, k,
                     preferred_element_type=jnp.float32) / math.sqrt(hs)
    mask = jnp.tril(jnp.ones((T, T), bool))
    att = jnp.where(mask[None, None], att, -jnp.inf)
    att = jax.nn.softmax(att, axis=-1)
    y = jnp.einsum("bhqk,bhkd->bhqd", att.astype(jnp.bfloat16), v,
                   preferred_element_type=jnp.float32)
    y = y.transpose(0, 2, 1, 3).reshape(B, T, C).astype(jnp.bfloat16)
    return jnp.dot(y, w_proj, preferred_element_type=jnp.float32) + params["b_proj"]


if __name__ == "__main__":
    def run_case(B, T, n_embd, n_head, t_q_pref, t_kv_pref, seed):
        key = jax.random.PRNGKey(seed)
        k_params, k_x = jax.random.split(key)
        params = init_params(k_params, n_embd)
        x = jax.random.normal(k_x, (B, T, n_embd), jnp.float32)
        prepared = prepare_params(params, n_embd, n_head)
        fwd = jax.jit(functools.partial(causal_self_attention, n_head=n_head,
                                        t_q_pref=t_q_pref, t_kv_pref=t_kv_pref))
        y = jax.block_until_ready(fwd(x, prepared))
        y_ref = _reference(x, params, n_head)
        assert y.shape == (B, T, n_embd)
        err = float(jnp.max(jnp.abs(y - y_ref)))
        assert jnp.allclose(y, y_ref, atol=2e-2, rtol=2e-2), f"mismatch vs reference: {err}"

    # Module-implied small shape: B=2, T=8 (== block_size), n_embd=32, n_head=4.
    run_case(2, 8, 32, 4, 256, 128, 0)
    # Larger case with small q/kv tiles (tq=32, tkv=16) to exercise the multi-q-tile
    # path, the dynamic unmasked kv loop and the multi-diagonal-tile masking.
    run_case(2, 64, 64, 4, 32, 16, 1)

    print("KERNEL_OK")
</pallas_src>

<mosaic_0001>
module attributes {stable_mosaic.version = 11 : i64} {
  func.func @_linear_kernel(%arg0: i32, %arg1: i32, %arg2: i32, %arg3: memref<16x32xbf16, #tpu.memory_space<vmem>>, %arg4: memref<1x32x32xbf16, #tpu.memory_space<vmem>>, %arg5: memref<1x1x32xf32, #tpu.memory_space<vmem>>, %arg6: memref<1x16x32xbf16, #tpu.memory_space<vmem>>) attributes {dimension_semantics = [#tpu.dimension_semantics<parallel>, #tpu.dimension_semantics<parallel>, #tpu.dimension_semantics<parallel>], iteration_bounds = array<i64: 1, 3, 1>, scalar_prefetch = 0 : i64, scratch_operands = 0 : i64, tpu.core_type = #tpu.core_type<tc>, window_params = [{transform_indices = @transform_0, window_bounds = array<i64: 16, 32>}, {transform_indices = @transform_1, window_bounds = array<i64: 1, 32, 32>}, {transform_indices = @transform_2, window_bounds = array<i64: 1, 1, 32>}, {transform_indices = @transform_3, window_bounds = array<i64: 1, 16, 32>}]} {
    %c0 = arith.constant 0 : index
    %c0_0 = arith.constant 0 : index
    %0 = vector.load %arg3[%c0, %c0_0] : memref<16x32xbf16, #tpu.memory_space<vmem>>, vector<16x32xbf16>
    %c0_1 = arith.constant 0 : index
    %c0_2 = arith.constant 0 : index
    %c0_3 = arith.constant 0 : index
    %1 = vector.load %arg4[%c0_1, %c0_2, %c0_3] : memref<1x32x32xbf16, #tpu.memory_space<vmem>>, vector<1x32x32xbf16>
    %2 = vector.shape_cast %1 : vector<1x32x32xbf16> to vector<32x32xbf16>
    %cst = arith.constant dense<0.000000e+00> : vector<16x32xf32>
    %3 = tpu.matmul %0, %2, %cst {dimension_numbers = #tpu.dot_dimension_numbers<[1], [0], [0], [1], [0, 0, 1, 1], [], []>} : vector<16x32xbf16>, vector<32x32xbf16>, vector<16x32xf32> -> vector<16x32xf32>
    %c0_4 = arith.constant 0 : index
    %c0_5 = arith.constant 0 : index
    %c0_6 = arith.constant 0 : index
    %4 = vector.load %arg5[%c0_4, %c0_5, %c0_6] : memref<1x1x32xf32, #tpu.memory_space<vmem>>, vector<1x1x32xf32>
    %5 = vector.shape_cast %4 : vector<1x1x32xf32> to vector<1x32xf32>
    %6 = vector.broadcast %5 : vector<1x32xf32> to vector<16x32xf32>
    %7 = arith.addf %3, %6 : vector<16x32xf32>
    %8 = arith.truncf %7 : vector<16x32xf32> to vector<16x32xbf16>
    %c0_7 = arith.constant 0 : index
    %c0_8 = arith.constant 0 : index
    %c0_9 = arith.constant 0 : index
    %9 = vector.load %arg6[%c0_7, %c0_8, %c0_9] : memref<1x16x32xbf16, #tpu.memory_space<vmem>>, vector<1x16x32xbf16>
    %10 = vector.shape_cast %9 : vector<1x16x32xbf16> to vector<16x32xbf16>
    %11 = vector.shape_cast %8 : vector<16x32xbf16> to vector<1x16x32xbf16>
    tpu.vector_store %arg6[%c0_7, %c0_8, %c0_9], %11 {strides = array<i32>} : memref<1x16x32xbf16, #tpu.memory_space<vmem>>, vector<1x16x32xbf16>,
    return
  }
  func.func @transform_0(%arg0: i32, %arg1: i32, %arg2: i32) -> (i32, i32) {
    %c0_i32 = arith.constant 0 : i32
    %c0_i32_0 = arith.constant 0 : i32
    return %arg0, %c0_i32 : i32, i32
  }
  func.func @transform_1(%arg0: i32, %arg1: i32, %arg2: i32) -> (i32, i32, i32) {
    %c0_i32 = arith.constant 0 : i32
    %c0_i32_0 = arith.constant 0 : i32
    return %arg1, %c0_i32, %arg2 : i32, i32, i32
  }
  func.func @transform_2(%arg0: i32, %arg1: i32, %arg2: i32) -> (i32, i32, i32) {
    %c0_i32 = arith.constant 0 : i32
    %c0_i32_0 = arith.constant 0 : i32
    return %arg1, %c0_i32, %arg2 : i32, i32, i32
  }
  func.func @transform_3(%arg0: i32, %arg1: i32, %arg2: i32) -> (i32, i32, i32) {
    %c0_i32 = arith.constant 0 : i32
    return %arg1, %arg0, %arg2 : i32, i32, i32
  }
}

module attributes {stable_mosaic.version = 11 : i64} {
  func.func @_flash_attn_kernel(%arg0: i32, %arg1: i32, %arg2: i32, %arg3: memref<1x1x8x32xbf16, #tpu.memory_space<vmem>>, %arg4: memref<1x1x8x32xbf16, #tpu.memory_space<vmem>>, %arg5: memref<1x1x8x32xbf16, #tpu.memory_space<vmem>>, %arg6: memref<1x8x32xbf16, #tpu.memory_space<vmem>>) attributes {dimension_semantics = [#tpu.dimension_semantics<parallel>, #tpu.dimension_semantics<parallel>, #tpu.dimension_semantics<parallel>], iteration_bounds = array<i64: 2, 1, 1>, scalar_prefetch = 0 : i64, scratch_operands = 0 : i64, tpu.core_type = #tpu.core_type<tc>, window_params = [{transform_indices = @transform_0, window_bounds = array<i64: 1, 1, 8, 32>}, {transform_indices = @transform_1, window_bounds = array<i64: 1, 1, 8, 32>}, {transform_indices = @transform_2, window_bounds = array<i64: 1, 1, 8, 32>}, {transform_indices = @transform_3, window_bounds = array<i64: 1, 8, 32>}]} {
    %c0 = arith.constant 0 : index
    %c0_0 = arith.constant 0 : index
    %c0_1 = arith.constant 0 : index
    %c0_2 = arith.constant 0 : index
    %0 = vector.load %arg3[%c0, %c0_0, %c0_1, %c0_2] : memref<1x1x8x32xbf16, #tpu.memory_space<vmem>>, vector<1x1x8x32xbf16>
    %1 = vector.shape_cast %0 : vector<1x1x8x32xbf16> to vector<8x32xbf16>
    %2 = vector.extract_strided_slice %1 {offsets = [0, 0], sizes = [8, 8], strides = [1, 1]} : vector<8x32xbf16> to vector<8x8xbf16>
    %3 = vector.extract_strided_slice %1 {offsets = [0, 8], sizes = [8, 8], strides = [1, 1]} : vector<8x32xbf16> to vector<8x8xbf16>
    %4 = vector.extract_strided_slice %1 {offsets = [0, 16], sizes = [8, 8], strides = [1, 1]} : vector<8x32xbf16> to vector<8x8xbf16>
    %5 = vector.extract_strided_slice %1 {offsets = [0, 24], sizes = [8, 8], strides = [1, 1]} : vector<8x32xbf16> to vector<8x8xbf16>
    %6 = tpu.iota {dimensions = array<i32: 0>} : vector<8x8xi32>
    %7 = tpu.iota {dimensions = array<i32: 1>} : vector<8x8xi32>
    %c0_i32 = arith.constant 0 : i32
    %8 = vector.broadcast %c0_i32 : i32 to vector<8x8xi32>
    %9 = arith.addi %7, %8 : vector<8x8xi32>
    %10 = arith.cmpi sle, %9, %6 : vector<8x8xi32>
    %cst = arith.constant 0.000000e+00 : f32
    %cst_3 = arith.constant -1.000000e+30 : f32
    %11 = vector.broadcast %cst : f32 to vector<8x8xf32>
    %12 = vector.broadcast %cst_3 : f32 to vector<8x8xf32>
    %13 = arith.select %10, %11, %12 : vector<8x8xi1>, vector<8x8xf32>
    %cst_4 = arith.constant 0xFF800000 : f32
    %14 = vector.broadcast %cst_4 : f32 to vector<8x1xf32>
    %cst_5 = arith.constant 0xFF800000 : f32
    %15 = vector.broadcast %cst_5 : f32 to vector<8x1xf32>
    %cst_6 = arith.constant 0xFF800000 : f32
    %16 = vector.broadcast %cst_6 : f32 to vector<8x1xf32>
    %cst_7 = arith.constant 0xFF800000 : f32
    %17 = vector.broadcast %cst_7 : f32 to vector<8x1xf32>
    %cst_8 = arith.constant 0.000000e+00 : f32
    %18 = vector.broadcast %cst_8 : f32 to vector<8x1xf32>
    %cst_9 = arith.constant 0.000000e+00 : f32
    %19 = vector.broadcast %cst_9 : f32 to vector<8x1xf32>
    %cst_10 = arith.constant 0.000000e+00 : f32
    %20 = vector.broadcast %cst_10 : f32 to vector<8x1xf32>
    %cst_11 = arith.constant 0.000000e+00 : f32
    %21 = vector.broadcast %cst_11 : f32 to vector<8x1xf32>
    %cst_12 = arith.constant 0.000000e+00 : f32
    %22 = vector.broadcast %cst_12 : f32 to vector<8x8xf32>
    %cst_13 = arith.constant 0.000000e+00 : f32
    %23 = vector.broadcast %cst_13 : f32 to vector<8x8xf32>
    %cst_14 = arith.constant 0.000000e+00 : f32
    %24 = vector.broadcast %cst_14 : f32 to vector<8x8xf32>
    %cst_15 = arith.constant 0.000000e+00 : f32
    %25 = vector.broadcast %cst_15 : f32 to vector<8x8xf32>
    %c1_i32 = arith.constant 1 : i32
    %26 = arith.muli %arg2, %c1_i32 : i32
    %c0_i32_16 = arith.constant 0 : i32
    %27 = arith.subi %26, %c0_i32_16 : i32
    %28 = arith.addi %c0_i32_16, %27 : i32
    %c1_i32_17 = arith.constant 1 : i32
    %29:12 = scf.for %arg7 = %c0_i32_16 to %28 step %c1_i32_17 iter_args(%arg8 = %14, %arg9 = %15, %arg10 = %16, %arg11 = %17, %arg12 = %18, %arg13 = %19, %arg14 = %20, %arg15 = %21, %arg16 = %22, %arg17 = %23, %arg18 = %24, %arg19 = %25) -> (vector<8x1xf32>, vector<8x1xf32>, vector<8x1xf32>, vector<8x1xf32>, vector<8x1xf32>, vector<8x1xf32>, vector<8x1xf32>, vector<8x1xf32>, vector<8x8xf32>, vector<8x8xf32>, vector<8x8xf32>, vector<8x8xf32>)  : i32 {
      %c8_i32_44 = arith.constant 8 : i32
      %140 = arith.muli %arg7, %c8_i32_44 : i32
      %141 = tpu.assume_multiple %140, 8 : i32
      %c0_45 = arith.constant 0 : index
      %c0_46 = arith.constant 0 : index
      %142 = arith.index_cast %141 : i32 to index
      %c0_47 = arith.constant 0 : index
      %143 = vector.load %arg4[%c0_45, %c0_46, %142, %c0_47] : memref<1x1x8x32xbf16, #tpu.memory_space<vmem>>, vector<1x1x8x32xbf16>
      %144 = vector.shape_cast %143 : vector<1x1x8x32xbf16> to vector<8x32xbf16>
      %c0_48 = arith.constant 0 : index
      %c0_49 = arith.constant 0 : index
      %145 = arith.index_cast %141 : i32 to index
      %c0_50 = arith.constant 0 : index
      %146 = vector.load %arg5[%c0_48, %c0_49, %145, %c0_50] : memref<1x1x8x32xbf16, #tpu.memory_space<vmem>>, vector<1x1x8x32xbf16>
      %147 = vector.shape_cast %146 : vector<1x1x8x32xbf16> to vector<8x32xbf16>
      %148 = vector.extract_strided_slice %144 {offsets = [0, 0], sizes = [8, 8], strides = [1, 1]} : vector<8x32xbf16> to vector<8x8xbf16>
      %149 = vector.extract_strided_slice %147 {offsets = [0, 0], sizes = [8, 8], strides = [1, 1]} : vector<8x32xbf16> to vector<8x8xbf16>
      %cst_51 = arith.constant dense<0.000000e+00> : vector<8x8xf32>
      %150 = tpu.matmul %2, %148, %cst_51 {dimension_numbers = #tpu.dot_dimension_numbers<[1], [1], [0], [0], [0, 0, 1, 0], [], []>} : vector<8x8xbf16>, vector<8x8xbf16>, vector<8x8xf32> -> vector<8x8xf32>
      %cst_52 = arith.constant dense<0xFF800000> : vector<8xf32>
      %151 = vector.multi_reduction <maximumf>, %150, %cst_52 [1] : vector<8x8xf32> to vector<8xf32>
      %152 = vector.shape_cast %151 : vector<8xf32> to vector<8x1xf32>
      %153 = arith.maximumf %arg8, %152 : vector<8x1xf32>
      %154 = arith.subf %arg8, %153 : vector<8x1xf32>
      %155 = math.exp %154 : vector<8x1xf32>
      %156 = vector.broadcast %153 : vector<8x1xf32> to vector<8x8xf32>
      %157 = arith.subf %150, %156 : vector<8x8xf32>
      %158 = math.exp %157 : vector<8x8xf32>
      %159 = arith.mulf %155, %arg12 : vector<8x1xf32>
      %cst_53 = arith.constant dense<0.000000e+00> : vector<8xf32>
      %160 = vector.multi_reduction <add>, %158, %cst_53 [1] : vector<8x8xf32> to vector<8xf32>
      %161 = vector.shape_cast %160 : vector<8xf32> to vector<8x1xf32>
      %162 = arith.addf %159, %161 : vector<8x1xf32>
      %163 = arith.truncf %158 : vector<8x8xf32> to vector<8x8xbf16>
      %cst_54 = arith.constant dense<0.000000e+00> : vector<8x8xf32>
      %164 = tpu.matmul %163, %149, %cst_54 {dimension_numbers = #tpu.dot_dimension_numbers<[1], [0], [0], [1], [0, 0, 1, 1], [], []>} : vector<8x8xbf16>, vector<8x8xbf16>, vector<8x8xf32> -> vector<8x8xf32>
      %165 = vector.broadcast %155 : vector<8x1xf32> to vector<8x8xf32>
      %166 = arith.mulf %165, %arg16 : vector<8x8xf32>
      %167 = arith.addf %166, %164 : vector<8x8xf32>
      %168 = vector.extract_strided_slice %144 {offsets = [0, 8], sizes = [8, 8], strides = [1, 1]} : vector<8x32xbf16> to vector<8x8xbf16>
      %169 = vector.extract_strided_slice %147 {offsets = [0, 8], sizes = [8, 8], strides = [1, 1]} : vector<8x32xbf16> to vector<8x8xbf16>
      %cst_55 = arith.constant dense<0.000000e+00> : vector<8x8xf32>
      %170 = tpu.matmul %3, %168, %cst_55 {dimension_numbers = #tpu.dot_dimension_numbers<[1], [1], [0], [0], [0, 0, 1, 0], [], []>} : vector<8x8xbf16>, vector<8x8xbf16>, vector<8x8xf32> -> vector<8x8xf32>
      %cst_56 = arith.constant dense<0xFF800000> : vector<8xf32>
      %171 = vector.multi_reduction <maximumf>, %170, %cst_56 [1] : vector<8x8xf32> to vector<8xf32>
      %172 = vector.shape_cast %171 : vector<8xf32> to vector<8x1xf32>
      %173 = arith.maximumf %arg9, %172 : vector<8x1xf32>
      %174 = arith.subf %arg9, %173 : vector<8x1xf32>
      %175 = math.exp %174 : vector<8x1xf32>
      %176 = vector.broadcast %173 : vector<8x1xf32> to vector<8x8xf32>
      %177 = arith.subf %170, %176 : vector<8x8xf32>
      %178 = math.exp %177 : vector<8x8xf32>
      %179 = arith.mulf %175, %arg13 : vector<8x1xf32>
      %cst_57 = arith.constant dense<0.000000e+00> : vector<8xf32>
      %180 = vector.multi_reduction <add>, %178, %cst_57 [1] : vector<8x8xf32> to vector<8xf32>
      %181 = vector.shape_cast %180 : vector<8xf32> to vector<8x1xf32>
      %182 = arith.addf %179, %181 : vector<8x1xf32>
      %183 = arith.truncf %178 : vector<8x8xf32> to vector<8x8xbf16>
      %cst_58 = arith.constant dense<0.000000e+00> : vector<8x8xf32>
      %184 = tpu.matmul %183, %169, %cst_58 {dimension_numbers = #tpu.dot_dimension_numbers<[1], [0], [0], [1], [0, 0, 1, 1], [], []>} : vector<8x8xbf16>, vector<8x8xbf16>, vector<8x8xf32> -> vector<8x8xf32>
      %185 = vector.broadcast %175 : vector<8x1xf32> to vector<8x8xf32>
      %186 = arith.mulf %185, %arg17 : vector<8x8xf32>
      %187 = arith.addf %186, %184 : vector<8x8xf32>
      %188 = vector.extract_strided_slice %144 {offsets = [0, 16], sizes = [8, 8], strides = [1, 1]} : vector<8x32xbf16> to vector<8x8xbf16>
      %189 = vector.extract_strided_slice %147 {offsets = [0, 16], sizes = [8, 8], strides = [1, 1]} : vector<8x32xbf16> to vector<8x8xbf16>
      %cst_59 = arith.constant dense<0.000000e+00> : vector<8x8xf32>
      %190 = tpu.matmul %4, %188, %cst_59 {dimension_numbers = #tpu.dot_dimension_numbers<[1], [1], [0], [0], [0, 0, 1, 0], [], []>} : vector<8x8xbf16>, vector<8x8xbf16>, vector<8x8xf32> -> vector<8x8xf32>
      %cst_60 = arith.constant dense<0xFF800000> : vector<8xf32>
      %191 = vector.multi_reduction <maximumf>, %190, %cst_60 [1] : vector<8x8xf32> to vector<8xf32>
      %192 = vector.shape_cast %191 : vector<8xf32> to vector<8x1xf32>
      %193 = arith.maximumf %arg10, %192 : vector<8x1xf32>
      %194 = arith.subf %arg10, %193 : vector<8x1xf32>
      %195 = math.exp %194 : vector<8x1xf32>
      %196 = vector.broadcast %193 : vector<8x1xf32> to vector<8x8xf32>
      %197 = arith.subf %190, %196 : vector<8x8xf32>
      %198 = math.exp %197 : vector<8x8xf32>
      %199 = arith.mulf %195, %arg14 : vector<8x1xf32>
      %cst_61 = arith.constant dense<0.000000e+00> : vector<8xf32>
      %200 = vector.multi_reduction <add>, %198, %cst_61 [1] : vector<8x8xf32> to vector<8xf32>
      %201 = vector.shape_cast %200 : vector<8xf32> to vector<8x1xf32>
      %202 = arith.addf %199, %201 : vector<8x1xf32>
      %203 = arith.truncf %198 : vector<8x8xf32> to vector<8x8xbf16>
      %cst_62 = arith.constant dense<0.000000e+00> : vector<8x8xf32>
      %204 = tpu.matmul %203, %189, %cst_62 {dimension_numbers = #tpu.dot_dimension_numbers<[1], [0], [0], [1], [0, 0, 1, 1], [], []>} : vector<8x8xbf16>, vector<8x8xbf16>, vector<8x8xf32> -> vector<8x8xf32>
      %205 = vector.broadcast %195 : vector<8x1xf32> to vector<8x8xf32>
      %206 = arith.mulf %205, %arg18 : vector<8x8xf32>
      %207 = arith.addf %206, %204 : vector<8x8xf32>
      %208 = vector.extract_strided_slice %144 {offsets = [0, 24], sizes = [8, 8], strides = [1, 1]} : vector<8x32xbf16> to vector<8x8xbf16>
      %209 = vector.extract_strided_slice %147 {offsets = [0, 24], sizes = [8, 8], strides = [1, 1]} : vector<8x32xbf16> to vector<8x8xbf16>
      %cst_63 = arith.constant dense<0.000000e+00> : vector<8x8xf32>
      %210 = tpu.matmul %5, %208, %cst_63 {dimension_numbers = #tpu.dot_dimension_numbers<[1], [1], [0], [0], [0, 0, 1, 0], [], []>} : vector<8x8xbf16>, vector<8x8xbf16>, vector<8x8xf32> -> vector<8x8xf32>
      %cst_64 = arith.constant dense<0xFF800000> : vector<8xf32>
      %211 = vector.multi_reduction <maximumf>, %210, %cst_64 [1] : vector<8x8xf32> to vector<8xf32>
      %212 = vector.shape_cast %211 : vector<8xf32> to vector<8x1xf32>
      %213 = arith.maximumf %arg11, %212 : vector<8x1xf32>
      %214 = arith.subf %arg11, %213 : vector<8x1xf32>
      %215 = math.exp %214 : vector<8x1xf32>
      %216 = vector.broadcast %213 : vector<8x1xf32> to vector<8x8xf32>
      %217 = arith.subf %210, %216 : vector<8x8xf32>
      %218 = math.exp %217 : vector<8x8xf32>
      %219 = arith.mulf %215, %arg15 : vector<8x1xf32>
      %cst_65 = arith.constant dense<0.000000e+00> : vector<8xf32>
      %220 = vector.multi_reduction <add>, %218, %cst_65 [1] : vector<8x8xf32> to vector<8xf32>
      %221 = vector.shape_cast %220 : vector<8xf32> to vector<8x1xf32>
      %222 = arith.addf %219, %221 : vector<8x1xf32>
      %223 = arith.truncf %218 : vector<8x8xf32> to vector<8x8xbf16>
      %cst_66 = arith.constant dense<0.000000e+00> : vector<8x8xf32>
      %224 = tpu.matmul %223, %209, %cst_66 {dimension_numbers = #tpu.dot_dimension_numbers<[1], [0], [0], [1], [0, 0, 1, 1], [], []>} : vector<8x8xbf16>, vector<8x8xbf16>, vector<8x8xf32> -> vector<8x8xf32>
      %225 = vector.broadcast %215 : vector<8x1xf32> to vector<8x8xf32>
      %226 = arith.mulf %225, %arg19 : vector<8x8xf32>
      %227 = arith.addf %226, %224 : vector<8x8xf32>
      scf.yield %153, %173, %193, %213, %162, %182, %202, %222, %167, %187, %207, %227 : vector<8x1xf32>, vector<8x1xf32>, vector<8x1xf32>, vector<8x1xf32>, vector<8x1xf32>, vector<8x1xf32>, vector<8x1xf32>, vector<8x1xf32>, vector<8x8xf32>, vector<8x8xf32>, vector<8x8xf32>, vector<8x8xf32>
    }
    %c8_i32 = arith.constant 8 : i32
    %30 = arith.muli %arg2, %c8_i32 : i32
    %c0_i32_18 = arith.constant 0 : i32
    %31 = arith.addi %30, %c0_i32_18 : i32
    %32 = tpu.assume_multiple %31, 8 : i32
    %c0_19 = arith.constant 0 : index
    %c0_20 = arith.constant 0 : index
    %33 = arith.index_cast %32 : i32 to index
    %c0_21 = arith.constant 0 : index
    %34 = vector.load %arg4[%c0_19, %c0_20, %33, %c0_21] : memref<1x1x8x32xbf16, #tpu.memory_space<vmem>>, vector<1x1x8x32xbf16>
    %35 = vector.shape_cast %34 : vector<1x1x8x32xbf16> to vector<8x32xbf16>
    %c0_22 = arith.constant 0 : index
    %c0_23 = arith.constant 0 : index
    %36 = arith.index_cast %32 : i32 to index
    %c0_24 = arith.constant 0 : index
    %37 = vector.load %arg5[%c0_22, %c0_23, %36, %c0_24] : memref<1x1x8x32xbf16, #tpu.memory_space<vmem>>, vector<1x1x8x32xbf16>
    %38 = vector.shape_cast %37 : vector<1x1x8x32xbf16> to vector<8x32xbf16>
    %39 = vector.extract_strided_slice %35 {offsets = [0, 0], sizes = [8, 8], strides = [1, 1]} : vector<8x32xbf16> to vector<8x8xbf16>
    %40 = vector.extract_strided_slice %38 {offsets = [0, 0], sizes = [8, 8], strides = [1, 1]} : vector<8x32xbf16> to vector<8x8xbf16>
    %cst_25 = arith.constant dense<0.000000e+00> : vector<8x8xf32>
    %41 = tpu.matmul %2, %39, %cst_25 {dimension_numbers = #tpu.dot_dimension_numbers<[1], [1], [0], [0], [0, 0, 1, 0], [], []>} : vector<8x8xbf16>, vector<8x8xbf16>, vector<8x8xf32> -> vector<8x8xf32>
    %42 = arith.addf %41, %13 : vector<8x8xf32>
    %cst_26 = arith.constant dense<0xFF800000> : vector<8xf32>
    %43 = vector.multi_reduction <maximumf>, %42, %cst_26 [1] : vector<8x8xf32> to vector<8xf32>
    %44 = vector.shape_cast %43 : vector<8xf32> to vector<8x1xf32>
    %45 = arith.maximumf %29#0, %44 : vector<8x1xf32>
    %46 = arith.subf %29#0, %45 : vector<8x1xf32>
    %47 = math.exp %46 : vector<8x1xf32>
    %48 = vector.broadcast %45 : vector<8x1xf32> to vector<8x8xf32>
    %49 = arith.subf %42, %48 : vector<8x8xf32>
    %50 = math.exp %49 : vector<8x8xf32>
    %51 = arith.mulf %47, %29#4 : vector<8x1xf32>
    %cst_27 = arith.constant dense<0.000000e+00> : vector<8xf32>
    %52 = vector.multi_reduction <add>, %50, %cst_27 [1] : vector<8x8xf32> to vector<8xf32>
    %53 = vector.shape_cast %52 : vector<8xf32> to vector<8x1xf32>
    %54 = arith.addf %51, %53 : vector<8x1xf32>
    %55 = arith.truncf %50 : vector<8x8xf32> to vector<8x8xbf16>
    %cst_28 = arith.constant dense<0.000000e+00> : vector<8x8xf32>
    %56 = tpu.matmul %55, %40, %cst_28 {dimension_numbers = #tpu.dot_dimension_numbers<[1], [0], [0], [1], [0, 0, 1, 1], [], []>} : vector<8x8xbf16>, vector<8x8xbf16>, vector<8x8xf32> -> vector<8x8xf32>
    %57 = vector.broadcast %47 : vector<8x1xf32> to vector<8x8xf32>
    %58 = arith.mulf %57, %29#8 : vector<8x8xf32>
    %59 = arith.addf %58, %56 : vector<8x8xf32>
    %60 = vector.extract_strided_slice %35 {offsets = [0, 8], sizes = [8, 8], strides = [1, 1]} : vector<8x32xbf16> to vector<8x8xbf16>
    %61 = vector.extract_strided_slice %38 {offsets = [0, 8], sizes = [8, 8], strides = [1, 1]} : vector<8x32xbf16> to vector<8x8xbf16>
    %cst_29 = arith.constant dense<0.000000e+00> : vector<8x8xf32>
    %62 = tpu.matmul %3, %60, %cst_29 {dimension_numbers = #tpu.dot_dimension_numbers<[1], [1], [0], [0], [0, 0, 1, 0], [], []>} : vector<8x8xbf16>, vector<8x8xbf16>, vector<8x8xf32> -> vector<8x8xf32>
    %63 = arith.addf %62, %13 : vector<8x8xf32>
    %cst_30 = arith.constant dense<0xFF800000> : vector<8xf32>
    %64 = vector.multi_reduction <maximumf>, %63, %cst_30 [1] : vector<8x8xf32> to vector<8xf32>
    %65 = vector.shape_cast %64 : vector<8xf32> to vector<8x1xf32>
    %66 = arith.maximumf %29#1, %65 : vector<8x1xf32>
    %67 = arith.subf %29#1, %66 : vector<8x1xf32>
    %68 = math.exp %67 : vector<8x1xf32>
    %69 = vector.broadcast %66 : vector<8x1xf32> to vector<8x8xf32>
    %70 = arith.subf %63, %69 : vector<8x8xf32>
    %71 = math.exp %70 : vector<8x8xf32>
    %72 = arith.mulf %68, %29#5 : vector<8x1xf32>
    %cst_31 = arith.constant dense<0.000000e+00> : vector<8xf32>
    %73 = vector.multi_reduction <add>, %71, %cst_31 [1] : vector<8x8xf32> to vector<8xf32>
    %74 = vector.shape_cast %73 : vector<8xf32> to vector<8x1xf32>
    %75 = arith.addf %72, %74 : vector<8x1xf32>
    %76 = arith.truncf %71 : vector<8x8xf32> to vector<8x8xbf16>
    %cst_32 = arith.constant dense<0.000000e+00> : vector<8x8xf32>
    %77 = tpu.matmul %76, %61, %cst_32 {dimension_numbers = #tpu.dot_dimension_numbers<[1], [0], [0], [1], [0, 0, 1, 1], [], []>} : vector<8x8xbf16>, vector<8x8xbf16>, vector<8x8xf32> -> vector<8x8xf32>
    %78 = vector.broadcast %68 : vector<8x1xf32> to vector<8x8xf32>
    %79 = arith.mulf %78, %29#9 : vector<8x8xf32>
    %80 = arith.addf %79, %77 : vector<8x8xf32>
    %81 = vector.extract_strided_slice %35 {offsets = [0, 16], sizes = [8, 8], strides = [1, 1]} : vector<8x32xbf16> to vector<8x8xbf16>
    %82 = vector.extract_strided_slice %38 {offsets = [0, 16], sizes = [8, 8], strides = [1, 1]} : vector<8x32xbf16> to vector<8x8xbf16>
    %cst_33 = arith.constant dense<0.000000e+00> : vector<8x8xf32>
    %83 = tpu.matmul %4, %81, %cst_33 {dimension_numbers = #tpu.dot_dimension_numbers<[1], [1], [0], [0], [0, 0, 1, 0], [], []>} : vector<8x8xbf16>, vector<8x8xbf16>, vector<8x8xf32> -> vector<8x8xf32>
    %84 = arith.addf %83, %13 : vector<8x8xf32>
    %cst_34 = arith.constant dense<0xFF800000> : vector<8xf32>
    %85 = vector.multi_reduction <maximumf>, %84, %cst_34 [1] : vector<8x8xf32> to vector<8xf32>
    %86 = vector.shape_cast %85 : vector<8xf32> to vector<8x1xf32>
    %87 = arith.maximumf %29#2, %86 : vector<8x1xf32>
    %88 = arith.subf %29#2, %87 : vector<8x1xf32>
    %89 = math.exp %88 : vector<8x1xf32>
    %90 = vector.broadcast %87 : vector<8x1xf32> to vector<8x8xf32>
    %91 = arith.subf %84, %90 : vector<8x8xf32>
    %92 = math.exp %91 : vector<8x8xf32>
    %93 = arith.mulf %89, %29#6 : vector<8x1xf32>
    %cst_35 = arith.constant dense<0.000000e+00> : vector<8xf32>
    %94 = vector.multi_reduction <add>, %92, %cst_35 [1] : vector<8x8xf32> to vector<8xf32>
    %95 = vector.shape_cast %94 : vector<8xf32> to vector<8x1xf32>
    %96 = arith.addf %93, %95 : vector<8x1xf32>
    %97 = arith.truncf %92 : vector<8x8xf32> to vector<8x8xbf16>
    %cst_36 = arith.constant dense<0.000000e+00> : vector<8x8xf32>
    %98 = tpu.matmul %97, %82, %cst_36 {dimension_numbers = #tpu.dot_dimension_numbers<[1], [0], [0], [1], [0, 0, 1, 1], [], []>} : vector<8x8xbf16>, vector<8x8xbf16>, vector<8x8xf32> -> vector<8x8xf32>
    %99 = vector.broadcast %89 : vector<8x1xf32> to vector<8x8xf32>
    %100 = arith.mulf %99, %29#10 : vector<8x8xf32>
    %101 = arith.addf %100, %98 : vector<8x8xf32>
    %102 = vector.extract_strided_slice %35 {offsets = [0, 24], sizes = [8, 8], strides = [1, 1]} : vector<8x32xbf16> to vector<8x8xbf16>
    %103 = vector.extract_strided_slice %38 {offsets = [0, 24], sizes = [8, 8], strides = [1, 1]} : vector<8x32xbf16> to vector<8x8xbf16>
    %cst_37 = arith.constant dense<0.000000e+00> : vector<8x8xf32>
    %104 = tpu.matmul %5, %102, %cst_37 {dimension_numbers = #tpu.dot_dimension_numbers<[1], [1], [0], [0], [0, 0, 1, 0], [], []>} : vector<8x8xbf16>, vector<8x8xbf16>, vector<8x8xf32> -> vector<8x8xf32>
    %105 = arith.addf %104, %13 : vector<8x8xf32>
    %cst_38 = arith.constant dense<0xFF800000> : vector<8xf32>
    %106 = vector.multi_reduction <maximumf>, %105, %cst_38 [1] : vector<8x8xf32> to vector<8xf32>
    %107 = vector.shape_cast %106 : vector<8xf32> to vector<8x1xf32>
    %108 = arith.maximumf %29#3, %107 : vector<8x1xf32>
    %109 = arith.subf %29#3, %108 : vector<8x1xf32>
    %110 = math.exp %109 : vector<8x1xf32>
    %111 = vector.broadcast %108 : vector<8x1xf32> to vector<8x8xf32>
    %112 = arith.subf %105, %111 : vector<8x8xf32>
    %113 = math.exp %112 : vector<8x8xf32>
    %114 = arith.mulf %110, %29#7 : vector<8x1xf32>
    %cst_39 = arith.constant dense<0.000000e+00> : vector<8xf32>
    %115 = vector.multi_reduction <add>, %113, %cst_39 [1] : vector<8x8xf32> to vector<8xf32>
    %116 = vector.shape_cast %115 : vector<8xf32> to vector<8x1xf32>
    %117 = arith.addf %114, %116 : vector<8x1xf32>
    %118 = arith.truncf %113 : vector<8x8xf32> to vector<8x8xbf16>
    %cst_40 = arith.constant dense<0.000000e+00> : vector<8x8xf32>
    %119 = tpu.matmul %118, %103, %cst_40 {dimension_numbers = #tpu.dot_dimension_numbers<[1], [0], [0], [1], [0, 0, 1, 1], [], []>} : vector<8x8xbf16>, vector<8x8xbf16>, vector<8x8xf32> -> vector<8x8xf32>
    %120 = vector.broadcast %110 : vector<8x1xf32> to vector<8x8xf32>
    %121 = arith.mulf %120, %29#11 : vector<8x8xf32>
    %122 = arith.addf %121, %119 : vector<8x8xf32>
    %123 = tpu.reciprocal %54 {approx = true} : vector<8x1xf32> -> vector<8x1xf32>
    %124 = vector.broadcast %123 : vector<8x1xf32> to vector<8x8xf32>
    %125 = arith.mulf %59, %124 : vector<8x8xf32>
    %126 = tpu.reciprocal %75 {approx = true} : vector<8x1xf32> -> vector<8x1xf32>
    %127 = vector.broadcast %126 : vector<8x1xf32> to vector<8x8xf32>
    %128 = arith.mulf %80, %127 : vector<8x8xf32>
    %129 = tpu.reciprocal %96 {approx = true} : vector<8x1xf32> -> vector<8x1xf32>
    %130 = vector.broadcast %129 : vector<8x1xf32> to vector<8x8xf32>
    %131 = arith.mulf %101, %130 : vector<8x8xf32>
    %132 = tpu.reciprocal %117 {approx = true} : vector<8x1xf32> -> vector<8x1xf32>
    %133 = vector.broadcast %132 : vector<8x1xf32> to vector<8x8xf32>
    %134 = arith.mulf %122, %133 : vector<8x8xf32>
    %135 = tpu.concatenate %125, %128, %131, %134 in 1 : vector<8x8xf32>, vector<8x8xf32>, vector<8x8xf32>, vector<8x8xf32> -> vector<8x32xf32>
    %136 = arith.truncf %135 : vector<8x32xf32> to vector<8x32xbf16>
    %c0_41 = arith.constant 0 : index
    %c0_42 = arith.constant 0 : index
    %c0_43 = arith.constant 0 : index
    %137 = vector.load %arg6[%c0_41, %c0_42, %c0_43] : memref<1x8x32xbf16, #tpu.memory_space<vmem>>, vector<1x8x32xbf16>
    %138 = vector.shape_cast %137 : vector<1x8x32xbf16> to vector<8x32xbf16>
    %139 = vector.shape_cast %136 : vector<8x32xbf16> to vector<1x8x32xbf16>
    tpu.vector_store %arg6[%c0_41, %c0_42, %c0_43], %139 {strides = array<i32>} : memref<1x8x32xbf16, #tpu.memory_space<vmem>>, vector<1x8x32xbf16>,
    return
  }
  func.func @transform_0(%arg0: i32, %arg1: i32, %arg2: i32) -> (i32, i32, i32, i32) {
    %c0_i32 = arith.constant 0 : i32
    %c0_i32_0 = arith.constant 0 : i32
    return %c0_i32, %arg0, %arg2, %arg1 : i32, i32, i32, i32
  }
  func.func @transform_1(%arg0: i32, %arg1: i32, %arg2: i32) -> (i32, i32, i32, i32) {
    %c1_i32 = arith.constant 1 : i32
    %c0_i32 = arith.constant 0 : i32
    %c0_i32_0 = arith.constant 0 : i32
    return %c1_i32, %arg0, %c0_i32, %arg1 : i32, i32, i32, i32
  }
  func.func @transform_2(%arg0: i32, %arg1: i32, %arg2: i32) -> (i32, i32, i32, i32) {
    %c2_i32 = arith.constant 2 : i32
    %c0_i32 = arith.constant 0 : i32
    %c0_i32_0 = arith.constant 0 : i32
    return %c2_i32, %arg0, %c0_i32, %arg1 : i32, i32, i32, i32
  }
  func.func @transform_3(%arg0: i32, %arg1: i32, %arg2: i32) -> (i32, i32, i32) {
    %c0_i32 = arith.constant 0 : i32
    return %arg0, %arg2, %arg1 : i32, i32, i32
  }
}

module attributes {stable_mosaic.version = 11 : i64} {
  func.func @_linear_kernel(%arg0: i32, %arg1: i32, %arg2: i32, %arg3: memref<16x32xbf16, #tpu.memory_space<vmem>>, %arg4: memref<1x32x32xbf16, #tpu.memory_space<vmem>>, %arg5: memref<1x1x32xf32, #tpu.memory_space<vmem>>, %arg6: memref<1x16x32xf32, #tpu.memory_space<vmem>>) attributes {dimension_semantics = [#tpu.dimension_semantics<parallel>, #tpu.dimension_semantics<parallel>, #tpu.dimension_semantics<parallel>], iteration_bounds = array<i64: 1, 1, 1>, scalar_prefetch = 0 : i64, scratch_operands = 0 : i64, tpu.core_type = #tpu.core_type<tc>, window_params = [{transform_indices = @transform_0, window_bounds = array<i64: 16, 32>}, {transform_indices = @transform_1, window_bounds = array<i64: 1, 32, 32>}, {transform_indices = @transform_2, window_bounds = array<i64: 1, 1, 32>}, {transform_indices = @transform_3, window_bounds = array<i64: 1, 16, 32>}]} {
    %c0 = arith.constant 0 : index
    %c0_0 = arith.constant 0 : index
    %0 = vector.load %arg3[%c0, %c0_0] : memref<16x32xbf16, #tpu.memory_space<vmem>>, vector<16x32xbf16>
    %c0_1 = arith.constant 0 : index
    %c0_2 = arith.constant 0 : index
    %c0_3 = arith.constant 0 : index
    %1 = vector.load %arg4[%c0_1, %c0_2, %c0_3] : memref<1x32x32xbf16, #tpu.memory_space<vmem>>, vector<1x32x32xbf16>
    %2 = vector.shape_cast %1 : vector<1x32x32xbf16> to vector<32x32xbf16>
    %cst = arith.constant dense<0.000000e+00> : vector<16x32xf32>
    %3 = tpu.matmul %0, %2, %cst {dimension_numbers = #tpu.dot_dimension_numbers<[1], [0], [0], [1], [0, 0, 1, 1], [], []>} : vector<16x32xbf16>, vector<32x32xbf16>, vector<16x32xf32> -> vector<16x32xf32>
    %c0_4 = arith.constant 0 : index
    %c0_5 = arith.constant 0 : index
    %c0_6 = arith.constant 0 : index
    %4 = vector.load %arg5[%c0_4, %c0_5, %c0_6] : memref<1x1x32xf32, #tpu.memory_space<vmem>>, vector<1x1x32xf32>
    %5 = vector.shape_cast %4 : vector<1x1x32xf32> to vector<1x32xf32>
    %6 = vector.broadcast %5 : vector<1x32xf32> to vector<16x32xf32>
    %7 = arith.addf %3, %6 : vector<16x32xf32>
    %c0_7 = arith.constant 0 : index
    %c0_8 = arith.constant 0 : index
    %c0_9 = arith.constant 0 : index
    %8 = vector.load %arg6[%c0_7, %c0_8, %c0_9] : memref<1x16x32xf32, #tpu.memory_space<vmem>>, vector<1x16x32xf32>
    %9 = vector.shape_cast %8 : vector<1x16x32xf32> to vector<16x32xf32>
    %10 = vector.shape_cast %7 : vector<16x32xf32> to vector<1x16x32xf32>
    tpu.vector_store %arg6[%c0_7, %c0_8, %c0_9], %10 {strides = array<i32>} : memref<1x16x32xf32, #tpu.memory_space<vmem>>, vector<1x16x32xf32>,
    return
  }
  func.func @transform_0(%arg0: i32, %arg1: i32, %arg2: i32) -> (i32, i32) {
    %c0_i32 = arith.constant 0 : i32
    %c0_i32_0 = arith.constant 0 : i32
    return %arg0, %c0_i32 : i32, i32
  }
  func.func @transform_1(%arg0: i32, %arg1: i32, %arg2: i32) -> (i32, i32, i32) {
    %c0_i32 = arith.constant 0 : i32
    %c0_i32_0 = arith.constant 0 : i32
    return %arg1, %c0_i32, %arg2 : i32, i32, i32
  }
  func.func @transform_2(%arg0: i32, %arg1: i32, %arg2: i32) -> (i32, i32, i32) {
    %c0_i32 = arith.constant 0 : i32
    %c0_i32_0 = arith.constant 0 : i32
    return %arg1, %c0_i32, %arg2 : i32, i32, i32
  }
  func.func @transform_3(%arg0: i32, %arg1: i32, %arg2: i32) -> (i32, i32, i32) {
    %c0_i32 = arith.constant 0 : i32
    return %arg1, %arg0, %arg2 : i32, i32, i32
  }
}

</mosaic_0001>

<llo_original>
// kernel: causal_self_attention.5
$region0: #{causal_self_attention.5}
  #allocation0 [shape = 'u32[]', space=smem, size = 0x4, offset = 0x4, fixed_abs, tag = 'smem constant byte address 0x4 - core index']
  #allocation1 [shape = 'u32[144,128]{1,0:T(1,128)}', space=vmem, size = 0x12000, scoped, tag = 'internal scratch']
  %s0 = inlined_call_operand.vmem [shape: bf16[16,32], index: 0, kind: input, shape index: {}]
  %s1 = inlined_call_operand.vmem [shape: bf16[1,32,32], index: 1, kind: input, shape index: {}]
  %s2 = inlined_call_operand.vmem [shape: f32[1,1,32], index: 2, kind: input, shape index: {}]
  %s3 = inlined_call_operand.hbm [shape: f32[1,16,32], index: 3, kind: output, shape index: {}]
  %s4 = sld [smem:[#allocation0]]
  $region22: #{causal_self_attention.5} parent=0
    _
  %s6 = ssub.s32 1, %s4
  %s7 = scalar_select 0, %s6, %s4
  $region1: #{causal_self_attention.5} parent=0
    #allocation2 [shape = 'u8[8192]{0}', space=vmem, size = 0x2000, scoped, tag = 'output window, operand 0, single buffered']
    #allocation3 [shape = 's32[1]{0}', space=sflag, size = 0x4, scoped, tag = 'scoped memory for causal_self_attention.5']
    %8 = vsyncpa [#allocation3], 0
    // Predicated region
    $region2: #{causal_self_attention.5} parent=1 // pred_check
      _
    $region3: #{causal_self_attention.5} parent=1 // pred_check_branch
      %10 = sbr.rel (0) target = $region5
    $region4: #{causal_self_attention.5} parent=1 // pred_region
      _
    $region5: #{causal_self_attention.5} parent=1 // pred_fallthru
      _
    // Predicated region
    $region6: #{causal_self_attention.5} parent=1 // pred_check
      _
    $region7: #{causal_self_attention.5} parent=1 // pred_check_branch
      %12 = sbr.rel (0) target = $region9
    $region8: #{causal_self_attention.5} parent=1 // pred_region
      _
    $region9: #{causal_self_attention.5} parent=1 // pred_fallthru
      _
    // Predicated region
    $region10: #{causal_self_attention.5} parent=1 // pred_check
      _
    $region11: #{causal_self_attention.5} parent=1 // pred_check_branch
      %14 = sbr.rel (0) target = $region13
    $region12: #{causal_self_attention.5} parent=1 // pred_region
      _
    $region13: #{causal_self_attention.5} parent=1 // pred_fallthru
      _
    %v16 = vld [vmem:[%s0] sm:$0xf]
    %v17 = vld [vmem:[%s0 + $0x4] sm:$0xf]
    %v18 = vld [vmem:[%s1] sm:$0xf]
    %v19 = vld [vmem:[%s1 + $0x4] sm:$0xf]
    %v20 = vld [vmem:[%s1 + $0x8] sm:$0xf]
    %v21 = vld [vmem:[%s1 + $0xc] sm:$0xf]
    %v22 = vld [vmem:[%s2] sm:$0x1]
    %v24 = vlaneseq
    %v25 = vshrl.u32 %v24, 7
    %v26 = vsub.s32 0, %v25
    %v27 = vrot.slane %v22, %v26
    %v31 = vunpack.c.l.b16 %v16
    %v32 = vunpack.c.l.b16 %v17
    %v33 = vpack.c.b16 %v32, %v31
    %v38 = vunpack.c.l.b16 %v18
    %v39 = vunpack.c.l.b16 %v19
    %v40 = vunpack.c.l.b16 %v20
    %v41 = vunpack.c.l.b16 %v21
    %v42 = vpack.c.b16 %v39, %v38
    %v43 = vpack.c.b16 %v41, %v40
    %vm46 = vcmask 261120
    %v48 = vsel %vm46, %v33, 0
    %50 = vmatprep.subr.bf16.mxu0 0
    %51 = vmatpush1.bf16.msra.mxu0 %v42
    %52 = vmatprep.subr.bf16.mxu0 0
    %53 = vmatpush1.bf16.msra.mxu0 %v43
    %54 = vmatprep.subr.bf16.mxu0 0
    %55 = vmatpush1.bf16.msra.mxu0 0
    %56 = vmatprep.subr.bf16.mxu0 0
    %57 = vmatpush1.bf16.msra.mxu0 0
    %58 = vmatprep.subr.bf16.mxu0 0
    %59 = vmatpush1.bf16.msra.mxu0 0
    %60 = vmatprep.subr.bf16.mxu0 0
    %61 = vmatpush1.bf16.msra.mxu0 0
    %62 = vmatprep.subr.bf16.mxu0 0
    %63 = vmatpush1.bf16.msra.mxu0 0
    %64 = vmatprep.subr.bf16.mxu0 0
    %65 = vmatpush1.bf16.msra.mxu0 0
    %66 = vmatprep.subr.bf16.mxu0 0
    %67 = vmatpush1.bf16.msra.mxu0 0
    %68 = vmatprep.subr.bf16.mxu0 0
    %69 = vmatpush1.bf16.msra.mxu0 0
    %70 = vmatprep.subr.bf16.mxu0 0
    %71 = vmatpush1.bf16.msra.mxu0 0
    %72 = vmatprep.subr.bf16.mxu0 0
    %73 = vmatpush1.bf16.msra.mxu0 0
    %74 = vmatprep.subr.bf16.mxu0 0
    %75 = vmatpush1.bf16.msra.mxu0 0
    %76 = vmatprep.subr.bf16.mxu0 0
    %77 = vmatpush1.bf16.msra.mxu0 0
    %78 = vmatprep.subr.bf16.mxu0 0
    %79 = vmatpush1.bf16.msra.mxu0 0
    %80 = vmatprep.subr.bf16.mxu0 0
    %81 = vmatpush1.bf16.msra.mxu0 0
    %82 = vmatprep.mubr.bf16.mxu0 0
    %83 = vmatmul.mubr.bf16.gmra.mrb[0].mxu0 %v48
    %v84 = vpop.f32.mrb[0].mxu0
    %v85 = vadd.f32 %v27, %v84
    %v86 = vpop.f32.mrb[0].mxu0
    %v87 = vpop.f32.mrb[0].mxu0
    %v88 = vadd.f32 %v27, %v87
    %v89 = vpop.f32.mrb[0].mxu0
    %90 = vdwg.mxu0
    %91 = vst.msk [vmem:[#allocation2] sm:$0xff] %vm46, %v85
    %92 = vst.msk [vmem:[#allocation2 + $0x8] sm:$0xff] %vm46, %v88
    // Predicated region
    $region14: #{causal_self_attention.5} parent=1 // pred_check
      _
    $region15: #{causal_self_attention.5} parent=1 // pred_check_branch
      %94 = sbr.rel (0) target = $region17
    $region16: #{causal_self_attention.5} parent=1 // pred_region
      %s96 = ssub.s32 256, 256
      %97 = vsyncadd [#allocation3], %s96
      %s98 = sshll.u32 [#allocation2], 4
      %s99 = int_to_ptr.vmem [resolvable:$true] %s98
      %104 = dma.vmem_to_hbm [thread:$0]  %s99, 256, %s3, [#allocation3], 128, 128, 8
    $region17: #{causal_self_attention.5} parent=1 // pred_fallthru
      _
    // Predicated region
    $region18: #{causal_self_attention.5} parent=1 // pred_check
      _
    $region19: #{causal_self_attention.5} parent=1 // pred_check_branch
      %106 = sbr.rel (0) target = $region21
    $region20: #{causal_self_attention.5} parent=1 // pred_region
      %107 = dma.done [#allocation3], 256
    $region21: #{causal_self_attention.5} parent=1 // pred_fallthru
      _
    %108 = vsyncpa [#allocation3], 1

// kernel: causal_self_attention.3
$region0: #{causal_self_attention.3}
  #allocation0 [shape = 'u32[]', space=smem, size = 0x4, offset = 0x4, fixed_abs, tag = 'smem constant byte address 0x4 - core index']
  #allocation1 [shape = 'u32[144,128]{1,0:T(1,128)}', space=vmem, size = 0x12000, scoped, tag = 'internal scratch']
  %s0 = inlined_call_operand.vmem [shape: bf16[16,32], index: 0, kind: input, shape index: {}]
  %s1 = inlined_call_operand.hbm [shape: bf16[3,32,32], index: 1, kind: input, shape index: {}]
  %s2 = inlined_call_operand.vmem [shape: f32[3,1,32], index: 2, kind: input, shape index: {}]
  %s3 = inlined_call_operand.vmem [shape: bf16[3,16,32], index: 3, kind: output, shape index: {}]
  %s4 = sld [smem:[#allocation0]]
  $region49: #{causal_self_attention.3} parent=0
    _
  %s6 = ssub.s32 1, %s4
  %s7 = scalar_select 0, %s6, %s4
  $region1: #{causal_self_attention.3} parent=0
    #allocation2 [shape = 'u8[16384]{0}', space=vmem, size = 0x4000, scoped, tag = 'input window, operand 1']
    #allocation3 [shape = 's32[2]{0}', space=sflag, size = 0x8, scoped, tag = 'scoped memory for causal_self_attention.3']
    %8 = vsyncpa [#allocation3], 0
    %s9 = scalar_lea.sflag [#allocation3], 1
    %10 = vsyncpa %s9, 0
    loop: start=0, step=1, limit=5
    $region2: #{causal_self_attention.3} parent=1 // loop_pre_header
      _
    $region3: #{causal_self_attention.3} parent=1 // loop_header
      %s12 = sphi 0, %s16
      %p13 = scmp.ge.s32.totalorder %s12, 5
      %s19 = sphi 0, %s38
      %s20 = sphi 0, %s34
      %s21 = sphi 0, %s30
      %s22 = sphi 0, %s19
      %s23 = sphi 0, %s20
      %s24 = sphi 0, %s21
      %s25 = sphi 0, %s22
      %s26 = sphi 0, %s23
      %s27 = sphi 0, %s24
      %s41 = sphi 0, %s43
      %s44 = sphi 0, %s41
      %s45 = sphi 0, %s44
      %s61 = sphi 0, %s45
      %s69 = sphi 0, %s71
      %s72 = sphi 0, %s69
      %s73 = sphi 0, %s72
      %s89 = sphi 0, %s73
      %s97 = sphi 0, %s99
      %s100 = sphi 0, %s97
      %s101 = sphi 0, %s100
      %s117 = sphi 0, %s101
      %s127 = sphi 0, %s129
      %s130 = sphi 0, %s127
      %s131 = sphi 0, %s130
      %s147 = sphi 0, %s131
    $region4: #{causal_self_attention.3} parent=1 // loop_header_branch
      %15 = sbr.rel (%p13) target = $region8
    $region5: #{causal_self_attention.3} parent=1 // loop_body
      %s17 = ssub.s32 %s12, 1
      %s18 = ssub.s32 %s12, 2
      %s28 = sadd.s32 1, %s21
      %p29 = scmp.ge.s32.totalorder %s28, 1
      %s30 = scalar_select %p29, 0, %s28
      %s31 = sadd.s32 1, %s20
      %s32 = scalar_select %p29, %s31, %s20
      %p33 = scmp.ge.s32.totalorder %s32, 3
      %s34 = scalar_select %p33, 0, %s32
      %s35 = sadd.s32 1, %s19
      %s36 = scalar_select %p33, %s35, %s19
      %p37 = scmp.ge.s32.totalorder %s36, 1
      %s38 = scalar_select %p37, 0, %s36
      %s39 = ssub.s32 %s19, %s38
      %p40 = scmp.eq.s32.totalorder %s39, 0
      %s42 = sadd.s32 %s41, 1
      %s43 = scalar_select %p40, %s41, %s42
      %p46 = pneg %p40
      %p47 = scmp.eq.s32.totalorder %s12, 2
      %p48 = por %p46, %p47
      %p49 = scmp.ne.s32.totalorder %s41, %s44
      %p50 = scmp.eq.s32.totalorder %s12, 0
      %p51 = por %p49, %p50
      %p52 = scmp.ne.s32.totalorder %s41, %s44
      %p53 = scmp.eq.s32.totalorder %s17, 2
      %p54 = por %p52, %p53
      %p55 = scmp.ne.s32.totalorder %s44, %s45
      %p56 = scmp.eq.s32.totalorder %s17, 0
      %p57 = por %p55, %p56
      %p58 = scmp.ne.s32.totalorder %s44, %s45
      %p59 = scmp.eq.s32.totalorder %s18, 2
      %p60 = por %p58, %p59
      %p62 = scmp.ne.s32.totalorder %s45, %s61
      %p63 = scmp.eq.s32.totalorder %s18, 0
      %p64 = por %p62, %p63
      %s65 = ssub.s32 %s20, %s34
      %s66 = ssub.s32 %s21, %s30
      %s67 = sor.u32 %s65, %s66
      %p68 = scmp.eq.s32.totalorder %s67, 0
      %s70 = sadd.s32 %s69, 1
      %s71 = scalar_select %p68, %s69, %s70
      %p74 = pneg %p68
      %p75 = scmp.eq.s32.totalorder %s12, 2
      %p76 = por %p74, %p75
      %p77 = scmp.ne.s32.totalorder %s69, %s72
      %p78 = scmp.eq.s32.totalorder %s12, 0
      %p79 = por %p77, %p78
      %p80 = scmp.ne.s32.totalorder %s69, %s72
      %p81 = scmp.eq.s32.totalorder %s17, 2
      %p82 = por %p80, %p81
      %p83 = scmp.ne.s32.totalorder %s72, %s73
      %p84 = scmp.eq.s32.totalorder %s17, 0
      %p85 = por %p83, %p84
      %p86 = scmp.ne.s32.totalorder %s72, %s73
      %p87 = scmp.eq.s32.totalorder %s18, 2
      %p88 = por %p86, %p87
      %p90 = scmp.ne.s32.totalorder %s73, %s89
      %p91 = scmp.eq.s32.totalorder %s18, 0
      %p92 = por %p90, %p91
      %s93 = ssub.s32 %s20, %s34
      %s94 = ssub.s32 %s21, %s30
      %s95 = sor.u32 %s93, %s94
      %p96 = scmp.eq.s32.totalorder %s95, 0
      %s98 = sadd.s32 %s97, 1
      %s99 = scalar_select %p96, %s97, %s98
      %p102 = pneg %p96
      %p103 = scmp.eq.s32.totalorder %s12, 2
      %p104 = por %p102, %p103
      %p105 = scmp.ne.s32.totalorder %s97, %s100
      %p106 = scmp.eq.s32.totalorder %s12, 0
      %p107 = por %p105, %p106
      %p108 = scmp.ne.s32.totalorder %s97, %s100
      %p109 = scmp.eq.s32.totalorder %s17, 2
      %p110 = por %p108, %p109
      %p111 = scmp.ne.s32.totalorder %s100, %s101
      %p112 = scmp.eq.s32.totalorder %s17, 0
      %p113 = por %p111, %p112
      %p114 = scmp.ne.s32.totalorder %s100, %s101
      %p115 = scmp.eq.s32.totalorder %s18, 2
      %p116 = por %p114, %p115
      %p118 = scmp.ne.s32.totalorder %s101, %s117
      %p119 = scmp.eq.s32.totalorder %s18, 0
      %p120 = por %p118, %p119
      %s121 = ssub.s32 %s20, %s34
      %s122 = ssub.s32 %s19, %s38
      %s123 = sor.u32 %s121, %s122
      %s124 = ssub.s32 %s21, %s30
      %s125 = sor.u32 %s123, %s124
      %p126 = scmp.eq.s32.totalorder %s125, 0
      %s128 = sadd.s32 %s127, 1
      %s129 = scalar_select %p126, %s127, %s128
      %p132 = pneg %p126
      %p133 = scmp.eq.s32.totalorder %s12, 2
      %p134 = por %p132, %p133
      %p135 = scmp.ne.s32.totalorder %s127, %s130
      %p136 = scmp.eq.s32.totalorder %s12, 0
      %p137 = por %p135, %p136
      %p138 = scmp.ne.s32.totalorder %s127, %s130
      %p139 = scmp.eq.s32.totalorder %s17, 2
      %p140 = por %p138, %p139
      %p141 = scmp.ne.s32.totalorder %s130, %s131
      %p142 = scmp.eq.s32.totalorder %s17, 0
      %p143 = por %p141, %p142
      %p144 = scmp.ne.s32.totalorder %s130, %s131
      %p145 = scmp.eq.s32.totalorder %s18, 2
      %p146 = por %p144, %p145
      %p148 = scmp.ne.s32.totalorder %s131, %s147
      %p149 = scmp.eq.s32.totalorder %s18, 0
      %p150 = por %p148, %p149
      %p151 = scmp.le.s32.totalorder 1, %s12
      %p152 = scmp.lt.s32.totalorder %s12, 4
      %p153 = pnand %p151, %p152
      %p154 = pneg %p153
      // Predicated region
      $region9: #{causal_self_attention.3} parent=5 // pred_check
        _
      $region10: #{causal_self_attention.3} parent=5 // pred_check_branch
        %156 = sbr.rel (%p153) target = $region12
      $region11: #{causal_self_attention.3} parent=5 // pred_region
        %s157 = ssub.s32 %s12, 1
        // Predicated region
        $region13: #{causal_self_attention.3} parent=11 // pred_check
          %p158 = pneg %p57
        $region14: #{causal_self_attention.3} parent=11 // pred_check_branch
          %160 = sbr.rel (%p158) target = $region16
        $region15: #{causal_self_attention.3} parent=11 // pred_region
          %s161 = smul.u32 2, %s22
          %p162 = scmp.lt.s32.totalorder %s161, 1
          %s163 = scalar_select %p162, %s161, 1
          %s164 = smul.addr %s163, 4
          %s165 = scalar_lea.vmem %s0, %s164
          %s166 = smul.u32 2, %s22
        $region16: #{causal_self_attention.3} parent=11 // pred_fallthru
          _
      $region12: #{causal_self_attention.3} parent=5 // pred_fallthru
        _
      %p167 = scmp.lt.s32.totalorder %s12, 3
      // Predicated region
      $region17: #{causal_self_attention.3} parent=5 // pred_check
        %p168 = pneg %p167
      $region18: #{causal_self_attention.3} parent=5 // pred_check_branch
        %170 = sbr.rel (%p168) target = $region20
      $region19: #{causal_self_attention.3} parent=5 // pred_region
        // Predicated region
        $region21: #{causal_self_attention.3} parent=19 // pred_check
          %p171 = pneg %p79
        $region22: #{causal_self_attention.3} parent=19 // pred_check_branch
          %173 = sbr.rel (%p171) target = $region24
        $region23: #{causal_self_attention.3} parent=19 // pred_region
          %s174 = sand.u32 %s69, 1
          %s175 = scalar_lea.sflag [#allocation3], %s174
          %s176 = sand.u32 %s69, 1
          %s177 = smul.addr %s176, 16
          %s178 = scalar_lea.vmem [#allocation2], %s177
          %s180 = ssub.s32 256, 256
          %181 = vsyncadd %s175, %s180
          %s182 = smul.addr %s20, 4
          %s183 = sadd.s32 %s21, %s182
          %s184 = smul.addr %s183, 64
          %s185 = scalar_lea.hbm %s1, %s184
          %s186 = sshll.u32 %s178, 4
          %s187 = int_to_ptr.vmem [resolvable:$true] %s186
          %192 = dma.hbm_to_vmem [thread:$0]  %s185, 256, %s187, %s175, 64, 64, 4
        $region24: #{causal_self_attention.3} parent=19 // pred_fallthru
          _
        // Predicated region
        $region25: #{causal_self_attention.3} parent=19 // pred_check
          %p193 = pneg %p107
        $region26: #{causal_self_attention.3} parent=19 // pred_check_branch
          %195 = sbr.rel (%p193) target = $region28
        $region27: #{causal_self_attention.3} parent=19 // pred_region
          %p196 = scmp.lt.s32.totalorder %s20, 2
          %s197 = scalar_select %p196, %s20, 2
          %p198 = scmp.lt.s32.totalorder %s21, 0
          %s199 = scalar_select %p198, %s21, 0
          %s200 = sadd.s32 %s199, %s197
          %s201 = scalar_lea.vmem %s2, %s200
        $region28: #{causal_self_attention.3} parent=19 // pred_fallthru
          _
      $region20: #{causal_self_attention.3} parent=5 // pred_fallthru
        _
      %p202 = scmp.le.s32.totalorder 1, %s12
      %p203 = scmp.lt.s32.totalorder %s12, 4
      %p204 = pnand %p202, %p203
      %p205 = pneg %p204
      // Predicated region
      $region29: #{causal_self_attention.3} parent=5 // pred_check
        _
      $region30: #{causal_self_attention.3} parent=5 // pred_check_branch
        %207 = sbr.rel (%p204) target = $region32
      $region31: #{causal_self_attention.3} parent=5 // pred_region
        %s208 = ssub.s32 %s12, 1
        %s209 = sand.u32 %s72, 1
        %s210 = scalar_lea.sflag [#allocation3], %s209
        %s211 = sand.u32 %s72, 1
        %s212 = smul.addr %s211, 16
        %s213 = scalar_lea.vmem [#allocation2], %s212
        // Predicated region
        $region33: #{causal_self_attention.3} parent=31 // pred_check
          %p214 = pneg %p85
        $region34: #{causal_self_attention.3} parent=31 // pred_check_branch
          %216 = sbr.rel (%p214) target = $region36
        $region35: #{causal_self_attention.3} parent=31 // pred_region
          %217 = dma.done %s210, 256
        $region36: #{causal_self_attention.3} parent=31 // pred_fallthru
          _
        %s218 = smul.u32 2, %s22
        %p219 = scmp.lt.s32.totalorder %s218, 1
        %s220 = scalar_select %p219, %s218, 1
        %s221 = smul.addr %s220, 4
        %s222 = scalar_lea.vmem %s0, %s221
        %p223 = pneg %p57
        %p224 = pneg %p54
        %s225 = sand.u32 %s72, 1
        %s226 = scalar_lea.sflag [#allocation3], %s225
        %s227 = sand.u32 %s72, 1
        %s228 = smul.addr %s227, 16
        %s229 = scalar_lea.vmem [#allocation2], %s228
        %p230 = pneg %p85
        %p231 = pneg %p82
        %p232 = scmp.lt.s32.totalorder %s23, 2
        %s233 = scalar_select %p232, %s23, 2
        %p234 = scmp.lt.s32.totalorder %s24, 0
        %s235 = scalar_select %p234, %s24, 0
        %s236 = sadd.s32 %s235, %s233
        %s237 = scalar_lea.vmem %s2, %s236
        %p238 = pneg %p113
        %p239 = pneg %p110
        %p240 = pneg %p143
        %p241 = pneg %p140
        %s242 = smul.u32 2, %s22
        %p243 = scmp.lt.s32.totalorder %s23, 2
        %s244 = scalar_select %p243, %s23, 2
        %p245 = scmp.lt.s32.totalorder %s242, 1
        %s246 = scalar_select %p245, %s242, 1
        %p247 = scmp.lt.s32.totalorder %s24, 0
        %s248 = scalar_select %p247, %s24, 0
        %s249 = sadd.s32 %s248, %s246
        %s250 = smul.addr %s244, 2
        %s251 = sadd.s32 %s249, %s250
        %s252 = smul.addr %s251, 4
        %s253 = scalar_lea.vmem %s3, %s252
        %s254 = smul.u32 2, %s22
        %p255 = scmp.lt.s32.totalorder %s254, 1
        %s256 = scalar_select %p255, %s254, 1
        %s257 = smul.addr %s256, 4
        %s258 = scalar_lea.vmem %s0, %s257
        %s259 = smul.u32 2, %s22
        %p260 = scmp.lt.s32.totalorder %s23, 2
        %s261 = scalar_select %p260, %s23, 2
        %p262 = scmp.lt.s32.totalorder %s24, 0
        %s263 = scalar_select %p262, %s24, 0
        %s264 = sadd.s32 %s263, %s261
        %s265 = scalar_lea.vmem %s2, %s264
        %s266 = smul.u32 2, %s22
        %p267 = scmp.lt.s32.totalorder %s23, 2
        %s268 = scalar_select %p267, %s23, 2
        %p269 = scmp.lt.s32.totalorder %s266, 1
        %s270 = scalar_select %p269, %s266, 1
        %p271 = scmp.lt.s32.totalorder %s24, 0
        %s272 = scalar_select %p271, %s24, 0
        %s273 = sadd.s32 %s272, %s270
        %s274 = smul.addr %s268, 2
        %s275 = sadd.s32 %s273, %s274
        %s276 = smul.addr %s275, 4
        %s277 = scalar_lea.vmem %s3, %s276
        %s278 = smul.u32 2, %s22
        %v280 = vld [vmem:[%s258] sm:$0xf]
        %v281 = vld [vmem:[%s258 + $0x4] sm:$0xf]
        %v282 = vld [vmem:[%s213] sm:$0xf]
        %v283 = vld [vmem:[%s213 + $0x4] sm:$0xf]
        %v284 = vld [vmem:[%s213 + $0x8] sm:$0xf]
        %v285 = vld [vmem:[%s213 + $0xc] sm:$0xf]
        %v286 = vld [vmem:[%s265] sm:$0x1]
        %v288 = vlaneseq
        %v289 = vshrl.u32 %v288, 7
        %v290 = vsub.s32 0, %v289
        %v291 = vrot.slane %v286, %v290
        %v295 = vunpack.c.l.b16 %v280
        %v296 = vunpack.c.l.b16 %v281
        %v297 = vpack.c.b16 %v296, %v295
        %v302 = vunpack.c.l.b16 %v282
        %v303 = vunpack.c.l.b16 %v283
        %v304 = vunpack.c.l.b16 %v284
        %v305 = vunpack.c.l.b16 %v285
        %v306 = vpack.c.b16 %v303, %v302
        %v307 = vpack.c.b16 %v305, %v304
        %vm310 = vcmask 261120
        %v312 = vsel %vm310, %v297, 0
        %314 = vmatprep.subr.bf16.mxu0 0
        %315 = vmatpush1.bf16.msra.mxu0 %v306
        %316 = vmatprep.subr.bf16.mxu0 0
        %317 = vmatpush1.bf16.msra.mxu0 %v307
        %318 = vmatprep.subr.bf16.mxu0 0
        %319 = vmatpush1.bf16.msra.mxu0 0
        %320 = vmatprep.subr.bf16.mxu0 0
        %321 = vmatpush1.bf16.msra.mxu0 0
        %322 = vmatprep.subr.bf16.mxu0 0
        %323 = vmatpush1.bf16.msra.mxu0 0
        %324 = vmatprep.subr.bf16.mxu0 0
        %325 = vmatpush1.bf16.msra.mxu0 0
        %326 = vmatprep.subr.bf16.mxu0 0
        %327 = vmatpush1.bf16.msra.mxu0 0
        %328 = vmatprep.subr.bf16.mxu0 0
        %329 = vmatpush1.bf16.msra.mxu0 0
        %330 = vmatprep.subr.bf16.mxu0 0
        %331 = vmatpush1.bf16.msra.mxu0 0
        %332 = vmatprep.subr.bf16.mxu0 0
        %333 = vmatpush1.bf16.msra.mxu0 0
        %334 = vmatprep.subr.bf16.mxu0 0
        %335 = vmatpush1.bf16.msra.mxu0 0
        %336 = vmatprep.subr.bf16.mxu0 0
        %337 = vmatpush1.bf16.msra.mxu0 0
        %338 = vmatprep.subr.bf16.mxu0 0
        %339 = vmatpush1.bf16.msra.mxu0 0
        %340 = vmatprep.subr.bf16.mxu0 0
        %341 = vmatpush1.bf16.msra.mxu0 0
        %342 = vmatprep.subr.bf16.mxu0 0
        %343 = vmatpush1.bf16.msra.mxu0 0
        %344 = vmatprep.subr.bf16.mxu0 0
        %345 = vmatpush1.bf16.msra.mxu0 0
        %346 = vmatprep.mubr.bf16.mxu0 0
        %347 = vmatmul.mubr.bf16.gmra.mrb[0].mxu0 %v312
        %v348 = vpop.f32.mrb[0].mxu0
        %v349 = vadd.f32 %v291, %v348
        %v350 = vpop.f32.mrb[0].mxu0
        %v351 = vpop.f32.mrb[0].mxu0
        %v352 = vadd.f32 %v291, %v351
        %v353 = vpop.f32.mrb[0].mxu0
        %354 = vdwg.mxu0
        %v355 = vpack.c.bf16 %v352, %v349
        %v357 = vunpack.c.l.b16 %v355
        %v358 = vunpack.c.h.b16 %v355
        %v359 = vpack.c.b16 %v357, %v357
        %v360 = vpack.c.b16 %v358, %v358
        %vm363 = vcmask 257024
        %364 = vst.msk [vmem:[%s277] sm:$0xf] %vm363, %v359
        %365 = vst.msk [vmem:[%s277 + $0x4] sm:$0xf] %vm363, %v360
        %s366 = smul.u32 2, %s22
        %p367 = scmp.lt.s32.totalorder %s23, 2
        %s368 = scalar_select %p367, %s23, 2
        %p369 = scmp.lt.s32.totalorder %s366, 1
        %s370 = scalar_select %p369, %s366, 1
        %p371 = scmp.lt.s32.totalorder %s24, 0
        %s372 = scalar_select %p371, %s24, 0
        %s373 = sadd.s32 %s372, %s370
        %s374 = smul.addr %s368, 2
        %s375 = sadd.s32 %s373, %s374
        %s376 = smul.addr %s375, 4
        %s377 = scalar_lea.vmem %s3, %s376
        // Predicated region
        $region37: #{causal_self_attention.3} parent=31 // pred_check
          %p378 = pneg %p140
        $region38: #{causal_self_attention.3} parent=31 // pred_check_branch
          %380 = sbr.rel (%p378) target = $region40
        $region39: #{causal_self_attention.3} parent=31 // pred_region
          %s381 = smul.u32 2, %s22
        $region40: #{causal_self_attention.3} parent=31 // pred_fallthru
          _
      $region32: #{causal_self_attention.3} parent=5 // pred_fallthru
        _
      %p382 = scmp.le.s32.totalorder 2, %s12
      // Predicated region
      $region41: #{causal_self_attention.3} parent=5 // pred_check
        %p383 = pneg %p382
      $region42: #{causal_self_attention.3} parent=5 // pred_check_branch
        %385 = sbr.rel (%p383) target = $region44
      $region43: #{causal_self_attention.3} parent=5 // pred_region
        %s386 = ssub.s32 %s12, 2
        // Predicated region
        $region45: #{causal_self_attention.3} parent=43 // pred_check
          %p387 = pneg %p146
        $region46: #{causal_self_attention.3} parent=43 // pred_check_branch
          %389 = sbr.rel (%p387) target = $region48
        $region47: #{causal_self_attention.3} parent=43 // pred_region
          %s390 = smul.u32 2, %s25
          %p391 = scmp.lt.s32.totalorder %s26, 2
          %s392 = scalar_select %p391, %s26, 2
          %p393 = scmp.lt.s32.totalorder %s390, 1
          %s394 = scalar_select %p393, %s390, 1
          %p395 = scmp.lt.s32.totalorder %s27, 0
          %s396 = scalar_select %p395, %s27, 0
          %s397 = sadd.s32 %s396, %s394
          %s398 = smul.addr %s392, 2
          %s399 = sadd.s32 %s397, %s398
          %s400 = smul.addr %s399, 4
          %s401 = scalar_lea.vmem %s3, %s400
        $region48: #{causal_self_attention.3} parent=43 // pred_fallthru
          _
      $region44: #{causal_self_attention.3} parent=5 // pred_fallthru
        _
    $region6: #{causal_self_attention.3} parent=1 // loop_footer
      %s16 = sadd.s32 1, %s12
    $region7: #{causal_self_attention.3} parent=1 // loop_footer_branch
      %11 = sbr.rel target = $region3
    $region8: #{causal_self_attention.3} parent=1 // loop_exit
      _
    %402 = vsyncpa [#allocation3], 1
    %s403 = scalar_lea.sflag [#allocation3], 1
    %404 = vsyncpa %s403, 1

// kernel: causal_self_attention.4
$region0: #{causal_self_attention.4}
  #allocation0 [shape = 'u32[]', space=smem, size = 0x4, offset = 0x4, fixed_abs, tag = 'smem constant byte address 0x4 - core index']
  #allocation1 [shape = 'u32[144,128]{1,0:T(1,128)}', space=vmem, size = 0x12000, scoped, tag = 'internal scratch']
  %s0 = inlined_call_operand.vmem [shape: bf16[3,2,8,32], index: 0, kind: input, shape index: {}, may-alias: {0,1,2}]
  %s1 = inlined_call_operand.vmem [shape: bf16[3,2,8,32], index: 1, kind: input, shape index: {}, may-alias: {0,1,2}]
  %s2 = inlined_call_operand.vmem [shape: bf16[3,2,8,32], index: 2, kind: input, shape index: {}, may-alias: {0,1,2}]
  %s3 = inlined_call_operand.vmem [shape: bf16[2,8,32], index: 3, kind: output, shape index: {}]
  %s4 = sld [smem:[#allocation0]]
  $region52: #{causal_self_attention.4} parent=0
    _
  %s6 = ssub.s32 1, %s4
  %s7 = scalar_select 0, %s6, %s4
  loop: start=0, step=1, limit=4
  $region2: #{causal_self_attention.4} parent=0 // loop_pre_header
    _
  $region3: #{causal_self_attention.4} parent=0 // loop_header
    %s9 = sphi 0, %s13
    %p10 = scmp.ge.s32.totalorder %s9, 4
    %s16 = sphi 0, %s35
    %s17 = sphi 0, %s31
    %s18 = sphi 0, %s27
    %s19 = sphi 0, %s16
    %s20 = sphi 0, %s17
    %s21 = sphi 0, %s18
    %s22 = sphi 0, %s19
    %s23 = sphi 0, %s20
    %s24 = sphi 0, %s21
    %s42 = sphi 0, %s44
    %s45 = sphi 0, %s42
    %s46 = sphi 0, %s45
    %s62 = sphi 0, %s46
    %s70 = sphi 0, %s72
    %s73 = sphi 0, %s70
    %s74 = sphi 0, %s73
    %s90 = sphi 0, %s74
    %s98 = sphi 0, %s100
    %s101 = sphi 0, %s98
    %s102 = sphi 0, %s101
    %s118 = sphi 0, %s102
    %s128 = sphi 0, %s130
    %s131 = sphi 0, %s128
    %s132 = sphi 0, %s131
    %s148 = sphi 0, %s132
  $region4: #{causal_self_attention.4} parent=0 // loop_header_branch
    %12 = sbr.rel (%p10) target = $region8
  $region5: #{causal_self_attention.4} parent=0 // loop_body
    %s14 = ssub.s32 %s9, 1
    %s15 = ssub.s32 %s9, 2
    %s25 = sadd.s32 1, %s18
    %p26 = scmp.ge.s32.totalorder %s25, 1
    %s27 = scalar_select %p26, 0, %s25
    %s28 = sadd.s32 1, %s17
    %s29 = scalar_select %p26, %s28, %s17
    %p30 = scmp.ge.s32.totalorder %s29, 1
    %s31 = scalar_select %p30, 0, %s29
    %s32 = sadd.s32 1, %s16
    %s33 = scalar_select %p30, %s32, %s16
    %p34 = scmp.ge.s32.totalorder %s33, 2
    %s35 = scalar_select %p34, 0, %s33
    %s36 = ssub.s32 %s16, %s35
    %s37 = ssub.s32 %s18, %s27
    %s38 = sor.u32 %s36, %s37
    %s39 = ssub.s32 %s17, %s31
    %s40 = sor.u32 %s38, %s39
    %p41 = scmp.eq.s32.totalorder %s40, 0
    %s43 = sadd.s32 %s42, 1
    %s44 = scalar_select %p41, %s42, %s43
    %p47 = pneg %p41
    %p48 = scmp.eq.s32.totalorder %s9, 1
    %p49 = por %p47, %p48
    %p50 = scmp.ne.s32.totalorder %s42, %s45
    %p51 = scmp.eq.s32.totalorder %s9, 0
    %p52 = por %p50, %p51
    %p53 = scmp.ne.s32.totalorder %s42, %s45
    %p54 = scmp.eq.s32.totalorder %s14, 1
    %p55 = por %p53, %p54
    %p56 = scmp.ne.s32.totalorder %s45, %s46
    %p57 = scmp.eq.s32.totalorder %s14, 0
    %p58 = por %p56, %p57
    %p59 = scmp.ne.s32.totalorder %s45, %s46
    %p60 = scmp.eq.s32.totalorder %s15, 1
    %p61 = por %p59, %p60
    %p63 = scmp.ne.s32.totalorder %s46, %s62
    %p64 = scmp.eq.s32.totalorder %s15, 0
    %p65 = por %p63, %p64
    %s66 = ssub.s32 %s16, %s35
    %s67 = ssub.s32 %s17, %s31
    %s68 = sor.u32 %s66, %s67
    %p69 = scmp.eq.s32.totalorder %s68, 0
    %s71 = sadd.s32 %s70, 1
    %s72 = scalar_select %p69, %s70, %s71
    %p75 = pneg %p69
    %p76 = scmp.eq.s32.totalorder %s9, 1
    %p77 = por %p75, %p76
    %p78 = scmp.ne.s32.totalorder %s70, %s73
    %p79 = scmp.eq.s32.totalorder %s9, 0
    %p80 = por %p78, %p79
    %p81 = scmp.ne.s32.totalorder %s70, %s73
    %p82 = scmp.eq.s32.totalorder %s14, 1
    %p83 = por %p81, %p82
    %p84 = scmp.ne.s32.totalorder %s73, %s74
    %p85 = scmp.eq.s32.totalorder %s14, 0
    %p86 = por %p84, %p85
    %p87 = scmp.ne.s32.totalorder %s73, %s74
    %p88 = scmp.eq.s32.totalorder %s15, 1
    %p89 = por %p87, %p88
    %p91 = scmp.ne.s32.totalorder %s74, %s90
    %p92 = scmp.eq.s32.totalorder %s15, 0
    %p93 = por %p91, %p92
    %s94 = ssub.s32 %s16, %s35
    %s95 = ssub.s32 %s17, %s31
    %s96 = sor.u32 %s94, %s95
    %p97 = scmp.eq.s32.totalorder %s96, 0
    %s99 = sadd.s32 %s98, 1
    %s100 = scalar_select %p97, %s98, %s99
    %p103 = pneg %p97
    %p104 = scmp.eq.s32.totalorder %s9, 1
    %p105 = por %p103, %p104
    %p106 = scmp.ne.s32.totalorder %s98, %s101
    %p107 = scmp.eq.s32.totalorder %s9, 0
    %p108 = por %p106, %p107
    %p109 = scmp.ne.s32.totalorder %s98, %s101
    %p110 = scmp.eq.s32.totalorder %s14, 1
    %p111 = por %p109, %p110
    %p112 = scmp.ne.s32.totalorder %s101, %s102
    %p113 = scmp.eq.s32.totalorder %s14, 0
    %p114 = por %p112, %p113
    %p115 = scmp.ne.s32.totalorder %s101, %s102
    %p116 = scmp.eq.s32.totalorder %s15, 1
    %p117 = por %p115, %p116
    %p119 = scmp.ne.s32.totalorder %s102, %s118
    %p120 = scmp.eq.s32.totalorder %s15, 0
    %p121 = por %p119, %p120
    %s122 = ssub.s32 %s16, %s35
    %s123 = ssub.s32 %s18, %s27
    %s124 = sor.u32 %s122, %s123
    %s125 = ssub.s32 %s17, %s31
    %s126 = sor.u32 %s124, %s125
    %p127 = scmp.eq.s32.totalorder %s126, 0
    %s129 = sadd.s32 %s128, 1
    %s130 = scalar_select %p127, %s128, %s129
    %p133 = pneg %p127
    %p134 = scmp.eq.s32.totalorder %s9, 1
    %p135 = por %p133, %p134
    %p136 = scmp.ne.s32.totalorder %s128, %s131
    %p137 = scmp.eq.s32.totalorder %s9, 0
    %p138 = por %p136, %p137
    %p139 = scmp.ne.s32.totalorder %s128, %s131
    %p140 = scmp.eq.s32.totalorder %s14, 1
    %p141 = por %p139, %p140
    %p142 = scmp.ne.s32.totalorder %s131, %s132
    %p143 = scmp.eq.s32.totalorder %s14, 0
    %p144 = por %p142, %p143
    %p145 = scmp.ne.s32.totalorder %s131, %s132
    %p146 = scmp.eq.s32.totalorder %s15, 1
    %p147 = por %p145, %p146
    %p149 = scmp.ne.s32.totalorder %s132, %s148
    %p150 = scmp.eq.s32.totalorder %s15, 0
    %p151 = por %p149, %p150
    %p152 = scmp.le.s32.totalorder 1, %s9
    %p153 = scmp.lt.s32.totalorder %s9, 3
    %p154 = pnand %p152, %p153
    %p155 = pneg %p154
    // Predicated region
    $region9: #{causal_self_attention.4} parent=5 // pred_check
      _
    $region10: #{causal_self_attention.4} parent=5 // pred_check_branch
      %157 = sbr.rel (%p154) target = $region12
    $region11: #{causal_self_attention.4} parent=5 // pred_region
      %s158 = ssub.s32 %s9, 1
    $region12: #{causal_self_attention.4} parent=5 // pred_fallthru
      _
    %p159 = scmp.lt.s32.totalorder %s9, 2
    // Predicated region
    $region13: #{causal_self_attention.4} parent=5 // pred_check
      %p160 = pneg %p159
    $region14: #{causal_self_attention.4} parent=5 // pred_check_branch
      %162 = sbr.rel (%p160) target = $region16
    $region15: #{causal_self_attention.4} parent=5 // pred_region
      // Predicated region
      $region17: #{causal_self_attention.4} parent=15 // pred_check
        %p163 = pneg %p52
      $region18: #{causal_self_attention.4} parent=15 // pred_check_branch
        %165 = sbr.rel (%p163) target = $region20
      $region19: #{causal_self_attention.4} parent=15 // pred_region
        %p166 = scmp.lt.s32.totalorder %s16, 1
        %s167 = scalar_select %p166, %s16, 1
        %p168 = scmp.lt.s32.totalorder %s18, 0
        %s169 = scalar_select %p168, %s18, 0
        %p170 = scmp.lt.s32.totalorder %s17, 0
        %s171 = scalar_select %p170, %s17, 0
        %s172 = sadd.s32 %s171, %s169
        %s173 = sadd.s32 %s172, %s167
        %s174 = smul.addr %s173, 4
        %s175 = scalar_lea.vmem %s0, %s174
      $region20: #{causal_self_attention.4} parent=15 // pred_fallthru
        _
      // Predicated region
      $region21: #{causal_self_attention.4} parent=15 // pred_check
        %p176 = pneg %p80
      $region22: #{causal_self_attention.4} parent=15 // pred_check_branch
        %178 = sbr.rel (%p176) target = $region24
      $region23: #{causal_self_attention.4} parent=15 // pred_region
        %p179 = scmp.lt.s32.totalorder %s16, 1
        %s180 = scalar_select %p179, %s16, 1
        %p181 = scmp.lt.s32.totalorder %s17, 0
        %s182 = scalar_select %p181, %s17, 0
        %s183 = sadd.s32 %s182, %s180
        %s184 = sadd.s32 %s183, 2
        %s185 = smul.addr %s184, 4
        %s186 = scalar_lea.vmem %s1, %s185
      $region24: #{causal_self_attention.4} parent=15 // pred_fallthru
        _
      // Predicated region
      $region25: #{causal_self_attention.4} parent=15 // pred_check
        %p187 = pneg %p108
      $region26: #{causal_self_attention.4} parent=15 // pred_check_branch
        %189 = sbr.rel (%p187) target = $region28
      $region27: #{causal_self_attention.4} parent=15 // pred_region
        %p190 = scmp.lt.s32.totalorder %s16, 1
        %s191 = scalar_select %p190, %s16, 1
        %p192 = scmp.lt.s32.totalorder %s17, 0
        %s193 = scalar_select %p192, %s17, 0
        %s194 = sadd.s32 %s193, %s191
        %s195 = sadd.s32 %s194, 4
        %s196 = smul.addr %s195, 4
        %s197 = scalar_lea.vmem %s2, %s196
      $region28: #{causal_self_attention.4} parent=15 // pred_fallthru
        _
    $region16: #{causal_self_attention.4} parent=5 // pred_fallthru
      _
    %p198 = scmp.le.s32.totalorder 1, %s9
    %p199 = scmp.lt.s32.totalorder %s9, 3
    %p200 = pnand %p198, %p199
    %p201 = pneg %p200
    // Predicated region
    $region29: #{causal_self_attention.4} parent=5 // pred_check
      _
    $region30: #{causal_self_attention.4} parent=5 // pred_check_branch
      %203 = sbr.rel (%p200) target = $region32
    $region31: #{causal_self_attention.4} parent=5 // pred_region
      %s204 = ssub.s32 %s9, 1
      %p205 = scmp.lt.s32.totalorder %s19, 1
      %s206 = scalar_select %p205, %s19, 1
      %p207 = scmp.lt.s32.totalorder %s21, 0
      %s208 = scalar_select %p207, %s21, 0
      %p209 = scmp.lt.s32.totalorder %s20, 0
      %s210 = scalar_select %p209, %s20, 0
      %s211 = sadd.s32 %s210, %s208
      %s212 = sadd.s32 %s211, %s206
      %s213 = smul.addr %s212, 4
      %s214 = scalar_lea.vmem %s0, %s213
      %p215 = pneg %p58
      %p216 = pneg %p55
      %p217 = scmp.lt.s32.totalorder %s19, 1
      %s218 = scalar_select %p217, %s19, 1
      %p219 = scmp.lt.s32.totalorder %s20, 0
      %s220 = scalar_select %p219, %s20, 0
      %s221 = sadd.s32 %s220, %s218
      %s222 = sadd.s32 %s221, 2
      %s223 = smul.addr %s222, 4
      %s224 = scalar_lea.vmem %s1, %s223
      %p225 = pneg %p86
      %p226 = pneg %p83
      %p227 = scmp.lt.s32.totalorder %s19, 1
      %s228 = scalar_select %p227, %s19, 1
      %p229 = scmp.lt.s32.totalorder %s20, 0
      %s230 = scalar_select %p229, %s20, 0
      %s231 = sadd.s32 %s230, %s228
      %s232 = sadd.s32 %s231, 4
      %s233 = smul.addr %s232, 4
      %s234 = scalar_lea.vmem %s2, %s233
      %p235 = pneg %p114
      %p236 = pneg %p111
      %p237 = pneg %p144
      %p238 = pneg %p141
      %p239 = scmp.lt.s32.totalorder %s19, 1
      %s240 = scalar_select %p239, %s19, 1
      %p241 = scmp.lt.s32.totalorder %s21, 0
      %s242 = scalar_select %p241, %s21, 0
      %p243 = scmp.lt.s32.totalorder %s20, 0
      %s244 = scalar_select %p243, %s20, 0
      %s245 = sadd.s32 %s244, %s242
      %s246 = sadd.s32 %s245, %s240
      %s247 = smul.addr %s246, 4
      %s248 = scalar_lea.vmem %s3, %s247
      %p249 = scmp.lt.s32.totalorder %s19, 1
      %s250 = scalar_select %p249, %s19, 1
      %p251 = scmp.lt.s32.totalorder %s21, 0
      %s252 = scalar_select %p251, %s21, 0
      %p253 = scmp.lt.s32.totalorder %s20, 0
      %s254 = scalar_select %p253, %s20, 0
      %s255 = sadd.s32 %s254, %s252
      %s256 = sadd.s32 %s255, %s250
      %s257 = smul.addr %s256, 4
      %s258 = scalar_lea.vmem %s0, %s257
      %p259 = scmp.lt.s32.totalorder %s19, 1
      %s260 = scalar_select %p259, %s19, 1
      %p261 = scmp.lt.s32.totalorder %s20, 0
      %s262 = scalar_select %p261, %s20, 0
      %s263 = sadd.s32 %s262, %s260
      %s264 = sadd.s32 %s263, 2
      %s265 = smul.addr %s264, 4
      %s266 = scalar_lea.vmem %s1, %s265
      %p267 = scmp.lt.s32.totalorder %s19, 1
      %s268 = scalar_select %p267, %s19, 1
      %p269 = scmp.lt.s32.totalorder %s20, 0
      %s270 = scalar_select %p269, %s20, 0
      %s271 = sadd.s32 %s270, %s268
      %s272 = sadd.s32 %s271, 4
      %s273 = smul.addr %s272, 4
      %s274 = scalar_lea.vmem %s2, %s273
      %p275 = scmp.lt.s32.totalorder %s19, 1
      %s276 = scalar_select %p275, %s19, 1
      %p277 = scmp.lt.s32.totalorder %s21, 0
      %s278 = scalar_select %p277, %s21, 0
      %p279 = scmp.lt.s32.totalorder %s20, 0
      %s280 = scalar_select %p279, %s20, 0
      %s281 = sadd.s32 %s280, %s278
      %s282 = sadd.s32 %s281, %s276
      %s283 = smul.addr %s282, 4
      %s284 = scalar_lea.vmem %s3, %s283
      %v286 = vld [vmem:[%s258] sm:$0xf]
      %v287 = vlaneseq
      %v288 = vshrl.u32 %v287, 7
      %v289 = vlaneseq
      %v290 = vand.u32 %v289, 127
      %vm291 = vcmp.le.s32.totalorder %v290, %v288
      %v292 = vsel %vm291, 0.0, -1e+30
      // While loop
      $region33: #{causal_self_attention.4} parent=31 // loop_pre_header
        _
      $region34: #{causal_self_attention.4} parent=31 // loop_header
        %s294 = sphi 0, %s296
        %p295 = scmp.ge.s32.totalorder %s294, %s21
        %v299 = vphi -inf, %v370
        %v300 = vphi -inf, %v491
        %v301 = vphi -inf, %v610
        %v302 = vphi -inf, %v726
        %v303 = vphi 0.0, %v381
        %v304 = vphi 0.0, %v502
        %v305 = vphi 0.0, %v621
        %v306 = vphi 0.0, %v737
        %v307 = vphi 0.0, %v431
        %v308 = vphi 0.0, %v556
        %v309 = vphi 0.0, %v672
        %v310 = vphi 0.0, %v788
      $region35: #{causal_self_attention.4} parent=31 // loop_header_branch
        %298 = sbr.rel (%p295) target = $region39
      $region36: #{causal_self_attention.4} parent=31 // loop_body
        %s311 = smul.u32 %s294, 8
        %s312 = sshra.s32 %s311, 3
        %s313 = sand.u32 %s311, 7
        %s314 = smul.addr %s312, 4
        %s315 = scalar_lea.vmem %s266, %s314
        %v316 = vld [vmem:[%s315] sm:$0xf]
        %s317 = smul.addr %s312, 4
        %s318 = scalar_lea.vmem %s274, %s317
        %v319 = vld [vmem:[%s318] sm:$0xf]
        %vm320 = vcmask 64512
        %v322 = vsel %vm320, %v286, 0
        %v325 = vsel %vm320, %v316, 0
        %327 = vmatprep.subr.bf16.mxu0 0
        %328 = vmatpush1.bf16.xpose.msra.mxu0 %v325
        %329 = vmatprep.subr.bf16.mxu0 0
        %330 = vmatpush1.bf16.xpose.msra.mxu0 0
        %331 = vmatprep.subr.bf16.mxu0 0
        %332 = vmatpush1.bf16.xpose.msra.mxu0 0
        %333 = vmatprep.subr.bf16.mxu0 0
        %334 = vmatpush1.bf16.xpose.msra.mxu0 0
        %335 = vmatprep.subr.bf16.mxu0 0
        %336 = vmatpush1.bf16.xpose.msra.mxu0 0
        %337 = vmatprep.subr.bf16.mxu0 0
        %338 = vmatpush1.bf16.xpose.msra.mxu0 0
        %339 = vmatprep.subr.bf16.mxu0 0
        %340 = vmatpush1.bf16.xpose.msra.mxu0 0
        %341 = vmatprep.subr.bf16.mxu0 0
        %342 = vmatpush1.bf16.xpose.msra.mxu0 0
        %343 = vmatprep.subr.bf16.mxu0 0
        %344 = vmatpush1.bf16.xpose.msra.mxu0 0
        %345 = vmatprep.subr.bf16.mxu0 0
        %346 = vmatpush1.bf16.xpose.msra.mxu0 0
        %347 = vmatprep.subr.bf16.mxu0 0
        %348 = vmatpush1.bf16.xpose.msra.mxu0 0
        %349 = vmatprep.subr.bf16.mxu0 0
        %350 = vmatpush1.bf16.xpose.msra.mxu0 0
        %351 = vmatprep.subr.bf16.mxu0 0
        %352 = vmatpush1.bf16.xpose.msra.mxu0 0
        %353 = vmatprep.subr.bf16.mxu0 0
        %354 = vmatpush1.bf16.xpose.msra.mxu0 0
        %355 = vmatprep.subr.bf16.mxu0 0
        %356 = vmatpush1.bf16.xpose.msra.mxu0 0
        %357 = vmatprep.subr.bf16.mxu0 0
        %358 = vmatpush1.bf16.xpose.msra.mxu0 0
        %359 = vmatprep.mubr.bf16.mxu0 0
        %360 = vmatmul.mubr.bf16.gmra.mrb[0].mxu0 %v322
        %v361 = vpop.f32.mrb[0].mxu0
        %v362 = vadd.f32 0.0, %v361
        %v363 = vpop.f32.mrb[0].mxu0
        %v364 = vpop.f32.mrb[0].mxu0
        %v365 = vpop.f32.mrb[0].mxu0
        %366 = vdwg.mxu0
        %v367 = vsel %vm320, %v362, -inf
        %368 = vmax.xlane.f32.xlu0 %v367
        %v369 = vpop.xlane.xlu0 %368
        %v370 = vmax.f32 %v299, %v369
        %v371 = vsub.f32 %v299, %v370
        %v372 = vmul.f32 %v371, 1.442695
        %v373 = vpow.pop %v372
        %v374 = vsub.f32 %v362, %v370
        %v375 = vmul.f32 %v374, 1.442695
        %v376 = vpow.pop %v375
        %v377 = vmul.f32 %v373, %v303
        %v378 = vsel %vm320, %v376, 0.0
        %379 = vadd.xlane.f32.xlu0 %v378
        %v380 = vpop.xlane.xlu0 %379
        %v381 = vadd.f32 %v377, %v380
        %v382 = vpack.c.bf16 %v376, %v376
        %v384 = vsel %vm320, %v382, 0
        %vm386 = vcmask 1043456
        %v388 = vsel %vm386, %v319, 0
        %390 = vmatprep.subr.bf16.mxu0 0
        %391 = vmatpush1.bf16.msra.mxu0 %v388
        %392 = vmatprep.subr.bf16.mxu0 0
        %393 = vmatpush1.bf16.msra.mxu0 0
        %394 = vmatprep.subr.bf16.mxu0 0
        %395 = vmatpush1.bf16.msra.mxu0 0
        %396 = vmatprep.subr.bf16.mxu0 0
        %397 = vmatpush1.bf16.msra.mxu0 0
        %398 = vmatprep.subr.bf16.mxu0 0
        %399 = vmatpush1.bf16.msra.mxu0 0
        %400 = vmatprep.subr.bf16.mxu0 0
        %401 = vmatpush1.bf16.msra.mxu0 0
        %402 = vmatprep.subr.bf16.mxu0 0
        %403 = vmatpush1.bf16.msra.mxu0 0
        %404 = vmatprep.subr.bf16.mxu0 0
        %405 = vmatpush1.bf16.msra.mxu0 0
        %406 = vmatprep.subr.bf16.mxu0 0
        %407 = vmatpush1.bf16.msra.mxu0 0
        %408 = vmatprep.subr.bf16.mxu0 0
        %409 = vmatpush1.bf16.msra.mxu0 0
        %410 = vmatprep.subr.bf16.mxu0 0
        %411 = vmatpush1.bf16.msra.mxu0 0
        %412 = vmatprep.subr.bf16.mxu0 0
        %413 = vmatpush1.bf16.msra.mxu0 0
        %414 = vmatprep.subr.bf16.mxu0 0
        %415 = vmatpush1.bf16.msra.mxu0 0
        %416 = vmatprep.subr.bf16.mxu0 0
        %417 = vmatpush1.bf16.msra.mxu0 0
        %418 = vmatprep.subr.bf16.mxu0 0
        %419 = vmatpush1.bf16.msra.mxu0 0
        %420 = vmatprep.subr.bf16.mxu0 0
        %421 = vmatpush1.bf16.msra.mxu0 0
        %422 = vmatprep.mubr.bf16.mxu0 0
        %423 = vmatmul.mubr.bf16.gmra.mrb[0].mxu0 %v384
        %v424 = vpop.f32.mrb[0].mxu0
        %v425 = vadd.f32 0.0, %v424
        %v426 = vpop.f32.mrb[0].mxu0
        %v427 = vpop.f32.mrb[0].mxu0
        %v428 = vpop.f32.mrb[0].mxu0
        %429 = vdwg.mxu0
        %v430 = vmul.f32 %v373, %v307
        %v431 = vadd.f32 %v430, %v425
        %v433 = vunpack.c.l.b16 %v286
        %v434 = vpack.c.b16 %v433, %v433
        %435 = vrot.lane.b32.xlu0 %v434, 120
        %v436 = vpop.permute.xlu0 %435
        %v438 = vunpack.c.l.b16 %v316
        %v439 = vpack.c.b16 %v438, %v438
        %440 = vrot.lane.b32.xlu0 %v439, 120
        %v441 = vpop.permute.xlu0 %440
        %v443 = vsel %vm320, %v436, 0
        %v446 = vsel %vm320, %v441, 0
        %448 = vmatprep.subr.bf16.mxu0 0
        %449 = vmatpush1.bf16.xpose.msra.mxu0 %v446
        %450 = vmatprep.subr.bf16.mxu0 0
        %451 = vmatpush1.bf16.xpose.msra.mxu0 0
        %452 = vmatprep.subr.bf16.mxu0 0
        %453 = vmatpush1.bf16.xpose.msra.mxu0 0
        %454 = vmatprep.subr.bf16.mxu0 0
        %455 = vmatpush1.bf16.xpose.msra.mxu0 0
        %456 = vmatprep.subr.bf16.mxu0 0
        %457 = vmatpush1.bf16.xpose.msra.mxu0 0
        %458 = vmatprep.subr.bf16.mxu0 0
        %459 = vmatpush1.bf16.xpose.msra.mxu0 0
        %460 = vmatprep.subr.bf16.mxu0 0
        %461 = vmatpush1.bf16.xpose.msra.mxu0 0
        %462 = vmatprep.subr.bf16.mxu0 0
        %463 = vmatpush1.bf16.xpose.msra.mxu0 0
        %464 = vmatprep.subr.bf16.mxu0 0
        %465 = vmatpush1.bf16.xpose.msra.mxu0 0
        %466 = vmatprep.subr.bf16.mxu0 0
        %467 = vmatpush1.bf16.xpose.msra.mxu0 0
        %468 = vmatprep.subr.bf16.mxu0 0
        %469 = vmatpush1.bf16.xpose.msra.mxu0 0
        %470 = vmatprep.subr.bf16.mxu0 0
        %471 = vmatpush1.bf16.xpose.msra.mxu0 0
        %472 = vmatprep.subr.bf16.mxu0 0
        %473 = vmatpush1.bf16.xpose.msra.mxu0 0
        %474 = vmatprep.subr.bf16.mxu0 0
        %475 = vmatpush1.bf16.xpose.msra.mxu0 0
        %476 = vmatprep.subr.bf16.mxu0 0
        %477 = vmatpush1.bf16.xpose.msra.mxu0 0
        %478 = vmatprep.subr.bf16.mxu0 0
        %479 = vmatpush1.bf16.xpose.msra.mxu0 0
        %480 = vmatprep.mubr.bf16.mxu0 0
        %481 = vmatmul.mubr.bf16.gmra.mrb[0].mxu0 %v443
        %v482 = vpop.f32.mrb[0].mxu0
        %v483 = vadd.f32 0.0, %v482
        %v484 = vpop.f32.mrb[0].mxu0
        %v485 = vpop.f32.mrb[0].mxu0
        %v486 = vpop.f32.mrb[0].mxu0
        %487 = vdwg.mxu0
        %v488 = vsel %vm320, %v483, -inf
        %489 = vmax.xlane.f32.xlu0 %v488
        %v490 = vpop.xlane.xlu0 %489
        %v491 = vmax.f32 %v300, %v490
        %v492 = vsub.f32 %v300, %v491
        %v493 = vmul.f32 %v492, 1.442695
        %v494 = vpow.pop %v493
        %v495 = vsub.f32 %v483, %v491
        %v496 = vmul.f32 %v495, 1.442695
        %v497 = vpow.pop %v496
        %v498 = vmul.f32 %v494, %v304
        %v499 = vsel %vm320, %v497, 0.0
        %500 = vadd.xlane.f32.xlu0 %v499
        %v501 = vpop.xlane.xlu0 %500
        %v502 = vadd.f32 %v498, %v501
        %v503 = vpack.c.bf16 %v497, %v497
        %v505 = vunpack.c.l.b16 %v319
        %v506 = vpack.c.b16 %v505, %v505
        %507 = vrot.lane.b32.xlu0 %v506, 120
        %v508 = vpop.permute.xlu0 %507
        %v510 = vsel %vm320, %v503, 0
        %v513 = vsel %vm386, %v508, 0
        %515 = vmatprep.subr.bf16.mxu0 0
        %516 = vmatpush1.bf16.msra.mxu0 %v513
        %517 = vmatprep.subr.bf16.mxu0 0
        %518 = vmatpush1.bf16.msra.mxu0 0
        %519 = vmatprep.subr.bf16.mxu0 0
        %520 = vmatpush1.bf16.msra.mxu0 0
        %521 = vmatprep.subr.bf16.mxu0 0
        %522 = vmatpush1.bf16.msra.mxu0 0
        %523 = vmatprep.subr.bf16.mxu0 0
        %524 = vmatpush1.bf16.msra.mxu0 0
        %525 = vmatprep.subr.bf16.mxu0 0
        %526 = vmatpush1.bf16.msra.mxu0 0
        %527 = vmatprep.subr.bf16.mxu0 0
        %528 = vmatpush1.bf16.msra.mxu0 0
        %529 = vmatprep.subr.bf16.mxu0 0
        %530 = vmatpush1.bf16.msra.mxu0 0
        %531 = vmatprep.subr.bf16.mxu0 0
        %532 = vmatpush1.bf16.msra.mxu0 0
        %533 = vmatprep.subr.bf16.mxu0 0
        %534 = vmatpush1.bf16.msra.mxu0 0
        %535 = vmatprep.subr.bf16.mxu0 0
        %536 = vmatpush1.bf16.msra.mxu0 0
        %537 = vmatprep.subr.bf16.mxu0 0
        %538 = vmatpush1.bf16.msra.mxu0 0
        %539 = vmatprep.subr.bf16.mxu0 0
        %540 = vmatpush1.bf16.msra.mxu0 0
        %541 = vmatprep.subr.bf16.mxu0 0
        %542 = vmatpush1.bf16.msra.mxu0 0
        %543 = vmatprep.subr.bf16.mxu0 0
        %544 = vmatpush1.bf16.msra.mxu0 0
        %545 = vmatprep.subr.bf16.mxu0 0
        %546 = vmatpush1.bf16.msra.mxu0 0
        %547 = vmatprep.mubr.bf16.mxu0 0
        %548 = vmatmul.mubr.bf16.gmra.mrb[0].mxu0 %v510
        %v549 = vpop.f32.mrb[0].mxu0
        %v550 = vadd.f32 0.0, %v549
        %v551 = vpop.f32.mrb[0].mxu0
        %v552 = vpop.f32.mrb[0].mxu0
        %v553 = vpop.f32.mrb[0].mxu0
        %554 = vdwg.mxu0
        %v555 = vmul.f32 %v494, %v308
        %v556 = vadd.f32 %v555, %v550
        %557 = vrot.lane.b32.xlu0 %v434, 112
        %v558 = vpop.permute.xlu0 %557
        %559 = vrot.lane.b32.xlu0 %v439, 112
        %v560 = vpop.permute.xlu0 %559
        %v562 = vsel %vm320, %v558, 0
        %v565 = vsel %vm320, %v560, 0
        %567 = vmatprep.subr.bf16.mxu0 0
        %568 = vmatpush1.bf16.xpose.msra.mxu0 %v565
        %569 = vmatprep.subr.bf16.mxu0 0
        %570 = vmatpush1.bf16.xpose.msra.mxu0 0
        %571 = vmatprep.subr.bf16.mxu0 0
        %572 = vmatpush1.bf16.xpose.msra.mxu0 0
        %573 = vmatprep.subr.bf16.mxu0 0
        %574 = vmatpush1.bf16.xpose.msra.mxu0 0
        %575 = vmatprep.subr.bf16.mxu0 0
        %576 = vmatpush1.bf16.xpose.msra.mxu0 0
        %577 = vmatprep.subr.bf16.mxu0 0
        %578 = vmatpush1.bf16.xpose.msra.mxu0 0
        %579 = vmatprep.subr.bf16.mxu0 0
        %580 = vmatpush1.bf16.xpose.msra.mxu0 0
        %581 = vmatprep.subr.bf16.mxu0 0
        %582 = vmatpush1.bf16.xpose.msra.mxu0 0
        %583 = vmatprep.subr.bf16.mxu0 0
        %584 = vmatpush1.bf16.xpose.msra.mxu0 0
        %585 = vmatprep.subr.bf16.mxu0 0
        %586 = vmatpush1.bf16.xpose.msra.mxu0 0
        %587 = vmatprep.subr.bf16.mxu0 0
        %588 = vmatpush1.bf16.xpose.msra.mxu0 0
        %589 = vmatprep.subr.bf16.mxu0 0
        %590 = vmatpush1.bf16.xpose.msra.mxu0 0
        %591 = vmatprep.subr.bf16.mxu0 0
        %592 = vmatpush1.bf16.xpose.msra.mxu0 0
        %593 = vmatprep.subr.bf16.mxu0 0
        %594 = vmatpush1.bf16.xpose.msra.mxu0 0
        %595 = vmatprep.subr.bf16.mxu0 0
        %596 = vmatpush1.bf16.xpose.msra.mxu0 0
        %597 = vmatprep.subr.bf16.mxu0 0
        %598 = vmatpush1.bf16.xpose.msra.mxu0 0
        %599 = vmatprep.mubr.bf16.mxu0 0
        %600 = vmatmul.mubr.bf16.gmra.mrb[0].mxu0 %v562
        %v601 = vpop.f32.mrb[0].mxu0
        %v602 = vadd.f32 0.0, %v601
        %v603 = vpop.f32.mrb[0].mxu0
        %v604 = vpop.f32.mrb[0].mxu0
        %v605 = vpop.f32.mrb[0].mxu0
        %606 = vdwg.mxu0
        %v607 = vsel %vm320, %v602, -inf
        %608 = vmax.xlane.f32.xlu0 %v607
        %v609 = vpop.xlane.xlu0 %608
        %v610 = vmax.f32 %v301, %v609
        %v611 = vsub.f32 %v301, %v610
        %v612 = vmul.f32 %v611, 1.442695
        %v613 = vpow.pop %v612
        %v614 = vsub.f32 %v602, %v610
        %v615 = vmul.f32 %v614, 1.442695
        %v616 = vpow.pop %v615
        %v617 = vmul.f32 %v613, %v305
        %v618 = vsel %vm320, %v616, 0.0
        %619 = vadd.xlane.f32.xlu0 %v618
        %v620 = vpop.xlane.xlu0 %619
        %v621 = vadd.f32 %v617, %v620
        %v622 = vpack.c.bf16 %v616, %v616
        %623 = vrot.lane.b32.xlu0 %v506, 112
        %v624 = vpop.permute.xlu0 %623
        %v626 = vsel %vm320, %v622, 0
        %v629 = vsel %vm386, %v624, 0
        %631 = vmatprep.subr.bf16.mxu0 0
        %632 = vmatpush1.bf16.msra.mxu0 %v629
        %633 = vmatprep.subr.bf16.mxu0 0
        %634 = vmatpush1.bf16.msra.mxu0 0
        %635 = vmatprep.subr.bf16.mxu0 0
        %636 = vmatpush1.bf16.msra.mxu0 0
        %637 = vmatprep.subr.bf16.mxu0 0
        %638 = vmatpush1.bf16.msra.mxu0 0
        %639 = vmatprep.subr.bf16.mxu0 0
        %640 = vmatpush1.bf16.msra.mxu0 0
        %641 = vmatprep.subr.bf16.mxu0 0
        %642 = vmatpush1.bf16.msra.mxu0 0
        %643 = vmatprep.subr.bf16.mxu0 0
        %644 = vmatpush1.bf16.msra.mxu0 0
        %645 = vmatprep.subr.bf16.mxu0 0
        %646 = vmatpush1.bf16.msra.mxu0 0
        %647 = vmatprep.subr.bf16.mxu0 0
        %648 = vmatpush1.bf16.msra.mxu0 0
        %649 = vmatprep.subr.bf16.mxu0 0
        %650 = vmatpush1.bf16.msra.mxu0 0
        %651 = vmatprep.subr.bf16.mxu0 0
        %652 = vmatpush1.bf16.msra.mxu0 0
        %653 = vmatprep.subr.bf16.mxu0 0
        %654 = vmatpush1.bf16.msra.mxu0 0
        %655 = vmatprep.subr.bf16.mxu0 0
        %656 = vmatpush1.bf16.msra.mxu0 0
        %657 = vmatprep.subr.bf16.mxu0 0
        %658 = vmatpush1.bf16.msra.mxu0 0
        %659 = vmatprep.subr.bf16.mxu0 0
        %660 = vmatpush1.bf16.msra.mxu0 0
        %661 = vmatprep.subr.bf16.mxu0 0
        %662 = vmatpush1.bf16.msra.mxu0 0
        %663 = vmatprep.mubr.bf16.mxu0 0
        %664 = vmatmul.mubr.bf16.gmra.mrb[0].mxu0 %v626
        %v665 = vpop.f32.mrb[0].mxu0
        %v666 = vadd.f32 0.0, %v665
        %v667 = vpop.f32.mrb[0].mxu0
        %v668 = vpop.f32.mrb[0].mxu0
        %v669 = vpop.f32.mrb[0].mxu0
        %670 = vdwg.mxu0
        %v671 = vmul.f32 %v613, %v309
        %v672 = vadd.f32 %v671, %v666
        %673 = vrot.lane.b32.xlu0 %v434, 104
        %v674 = vpop.permute.xlu0 %673
        %675 = vrot.lane.b32.xlu0 %v439, 104
        %v676 = vpop.permute.xlu0 %675
        %v678 = vsel %vm320, %v674, 0
        %v681 = vsel %vm320, %v676, 0
        %683 = vmatprep.subr.bf16.mxu0 0
        %684 = vmatpush1.bf16.xpose.msra.mxu0 %v681
        %685 = vmatprep.subr.bf16.mxu0 0
        %686 = vmatpush1.bf16.xpose.msra.mxu0 0
        %687 = vmatprep.subr.bf16.mxu0 0
        %688 = vmatpush1.bf16.xpose.msra.mxu0 0
        %689 = vmatprep.subr.bf16.mxu0 0
        %690 = vmatpush1.bf16.xpose.msra.mxu0 0
        %691 = vmatprep.subr.bf16.mxu0 0
        %692 = vmatpush1.bf16.xpose.msra.mxu0 0
        %693 = vmatprep.subr.bf16.mxu0 0
        %694 = vmatpush1.bf16.xpose.msra.mxu0 0
        %695 = vmatprep.subr.bf16.mxu0 0
        %696 = vmatpush1.bf16.xpose.msra.mxu0 0
        %697 = vmatprep.subr.bf16.mxu0 0
        %698 = vmatpush1.bf16.xpose.msra.mxu0 0
        %699 = vmatprep.subr.bf16.mxu0 0
        %700 = vmatpush1.bf16.xpose.msra.mxu0 0
        %701 = vmatprep.subr.bf16.mxu0 0
        %702 = vmatpush1.bf16.xpose.msra.mxu0 0
        %703 = vmatprep.subr.bf16.mxu0 0
        %704 = vmatpush1.bf16.xpose.msra.mxu0 0
        %705 = vmatprep.subr.bf16.mxu0 0
        %706 = vmatpush1.bf16.xpose.msra.mxu0 0
        %707 = vmatprep.subr.bf16.mxu0 0
        %708 = vmatpush1.bf16.xpose.msra.mxu0 0
        %709 = vmatprep.subr.bf16.mxu0 0
        %710 = vmatpush1.bf16.xpose.msra.mxu0 0
        %711 = vmatprep.subr.bf16.mxu0 0
        %712 = vmatpush1.bf16.xpose.msra.mxu0 0
        %713 = vmatprep.subr.bf16.mxu0 0
        %714 = vmatpush1.bf16.xpose.msra.mxu0 0
        %715 = vmatprep.mubr.bf16.mxu0 0
        %716 = vmatmul.mubr.bf16.gmra.mrb[0].mxu0 %v678
        %v717 = vpop.f32.mrb[0].mxu0
        %v718 = vadd.f32 0.0, %v717
        %v719 = vpop.f32.mrb[0].mxu0
        %v720 = vpop.f32.mrb[0].mxu0
        %v721 = vpop.f32.mrb[0].mxu0
        %722 = vdwg.mxu0
        %v723 = vsel %vm320, %v718, -inf
        %724 = vmax.xlane.f32.xlu0 %v723
        %v725 = vpop.xlane.xlu0 %724
        %v726 = vmax.f32 %v302, %v725
        %v727 = vsub.f32 %v302, %v726
        %v728 = vmul.f32 %v727, 1.442695
        %v729 = vpow.pop %v728
        %v730 = vsub.f32 %v718, %v726
        %v731 = vmul.f32 %v730, 1.442695
        %v732 = vpow.pop %v731
        %v733 = vmul.f32 %v729, %v306
        %v734 = vsel %vm320, %v732, 0.0
        %735 = vadd.xlane.f32.xlu0 %v734
        %v736 = vpop.xlane.xlu0 %735
        %v737 = vadd.f32 %v733, %v736
        %v738 = vpack.c.bf16 %v732, %v732
        %739 = vrot.lane.b32.xlu0 %v506, 104
        %v740 = vpop.permute.xlu0 %739
        %v742 = vsel %vm320, %v738, 0
        %v745 = vsel %vm386, %v740, 0
        %747 = vmatprep.subr.bf16.mxu0 0
        %748 = vmatpush1.bf16.msra.mxu0 %v745
        %749 = vmatprep.subr.bf16.mxu0 0
        %750 = vmatpush1.bf16.msra.mxu0 0
        %751 = vmatprep.subr.bf16.mxu0 0
        %752 = vmatpush1.bf16.msra.mxu0 0
        %753 = vmatprep.subr.bf16.mxu0 0
        %754 = vmatpush1.bf16.msra.mxu0 0
        %755 = vmatprep.subr.bf16.mxu0 0
        %756 = vmatpush1.bf16.msra.mxu0 0
        %757 = vmatprep.subr.bf16.mxu0 0
        %758 = vmatpush1.bf16.msra.mxu0 0
        %759 = vmatprep.subr.bf16.mxu0 0
        %760 = vmatpush1.bf16.msra.mxu0 0
        %761 = vmatprep.subr.bf16.mxu0 0
        %762 = vmatpush1.bf16.msra.mxu0 0
        %763 = vmatprep.subr.bf16.mxu0 0
        %764 = vmatpush1.bf16.msra.mxu0 0
        %765 = vmatprep.subr.bf16.mxu0 0
        %766 = vmatpush1.bf16.msra.mxu0 0
        %767 = vmatprep.subr.bf16.mxu0 0
        %768 = vmatpush1.bf16.msra.mxu0 0
        %769 = vmatprep.subr.bf16.mxu0 0
        %770 = vmatpush1.bf16.msra.mxu0 0
        %771 = vmatprep.subr.bf16.mxu0 0
        %772 = vmatpush1.bf16.msra.mxu0 0
        %773 = vmatprep.subr.bf16.mxu0 0
        %774 = vmatpush1.bf16.msra.mxu0 0
        %775 = vmatprep.subr.bf16.mxu0 0
        %776 = vmatpush1.bf16.msra.mxu0 0
        %777 = vmatprep.subr.bf16.mxu0 0
        %778 = vmatpush1.bf16.msra.mxu0 0
        %779 = vmatprep.mubr.bf16.mxu0 0
        %780 = vmatmul.mubr.bf16.gmra.mrb[0].mxu0 %v742
        %v781 = vpop.f32.mrb[0].mxu0
        %v782 = vadd.f32 0.0, %v781
        %v783 = vpop.f32.mrb[0].mxu0
        %v784 = vpop.f32.mrb[0].mxu0
        %v785 = vpop.f32.mrb[0].mxu0
        %786 = vdwg.mxu0
        %v787 = vmul.f32 %v729, %v310
        %v788 = vadd.f32 %v787, %v782
      $region37: #{causal_self_attention.4} parent=31 // loop_footer
        %s296 = sadd.s32 %s294, 1
      $region38: #{causal_self_attention.4} parent=31 // loop_footer_branch
        %293 = sbr.rel target = $region34
      $region39: #{causal_self_attention.4} parent=31 // loop_exit
        _
      %s789 = smul.u32 %s21, 8
      %s790 = sshra.s32 %s789, 3
      %s791 = sand.u32 %s789, 7
      %s792 = smul.addr %s790, 4
      %s793 = scalar_lea.vmem %s266, %s792
      %v794 = vld [vmem:[%s793] sm:$0xf]
      %s795 = smul.addr %s790, 4
      %s796 = scalar_lea.vmem %s274, %s795
      %v797 = vld [vmem:[%s796] sm:$0xf]
      %vm798 = vcmask 64512
      %v800 = vsel %vm798, %v286, 0
      %v803 = vsel %vm798, %v794, 0
      %805 = vmatprep.subr.bf16.mxu0 0
      %806 = vmatpush1.bf16.xpose.msra.mxu0 %v803
      %807 = vmatprep.subr.bf16.mxu0 0
      %808 = vmatpush1.bf16.xpose.msra.mxu0 0
      %809 = vmatprep.subr.bf16.mxu0 0
      %810 = vmatpush1.bf16.xpose.msra.mxu0 0
      %811 = vmatprep.subr.bf16.mxu0 0
      %812 = vmatpush1.bf16.xpose.msra.mxu0 0
      %813 = vmatprep.subr.bf16.mxu0 0
      %814 = vmatpush1.bf16.xpose.msra.mxu0 0
      %815 = vmatprep.subr.bf16.mxu0 0
      %816 = vmatpush1.bf16.xpose.msra.mxu0 0
      %817 = vmatprep.subr.bf16.mxu0 0
      %818 = vmatpush1.bf16.xpose.msra.mxu0 0
      %819 = vmatprep.subr.bf16.mxu0 0
      %820 = vmatpush1.bf16.xpose.msra.mxu0 0
      %821 = vmatprep.subr.bf16.mxu0 0
      %822 = vmatpush1.bf16.xpose.msra.mxu0 0
      %823 = vmatprep.subr.bf16.mxu0 0
      %824 = vmatpush1.bf16.xpose.msra.mxu0 0
      %825 = vmatprep.subr.bf16.mxu0 0
      %826 = vmatpush1.bf16.xpose.msra.mxu0 0
      %827 = vmatprep.subr.bf16.mxu0 0
      %828 = vmatpush1.bf16.xpose.msra.mxu0 0
      %829 = vmatprep.subr.bf16.mxu0 0
      %830 = vmatpush1.bf16.xpose.msra.mxu0 0
      %831 = vmatprep.subr.bf16.mxu0 0
      %832 = vmatpush1.bf16.xpose.msra.mxu0 0
      %833 = vmatprep.subr.bf16.mxu0 0
      %834 = vmatpush1.bf16.xpose.msra.mxu0 0
      %835 = vmatprep.subr.bf16.mxu0 0
      %836 = vmatpush1.bf16.xpose.msra.mxu0 0
      %837 = vmatprep.mubr.bf16.mxu0 0
      %838 = vmatmul.mubr.bf16.gmra.mrb[0].mxu0 %v800
      %v839 = vpop.f32.mrb[0].mxu0
      %v840 = vadd.f32 %v292, %v839
      %v841 = vpop.f32.mrb[0].mxu0
      %v842 = vpop.f32.mrb[0].mxu0
      %v843 = vpop.f32.mrb[0].mxu0
      %844 = vdwg.mxu0
      %v845 = vsel %vm798, %v840, -inf
      %846 = vmax.xlane.f32.xlu0 %v845
      %v847 = vpop.xlane.xlu0 %846
      %v848 = vmax.f32 %v299, %v847
      %v849 = vsub.f32 %v299, %v848
      %v850 = vmul.f32 %v849, 1.442695
      %v851 = vpow.pop %v850
      %v852 = vsub.f32 %v840, %v848
      %v853 = vmul.f32 %v852, 1.442695
      %v854 = vpow.pop %v853
      %v855 = vmul.f32 %v851, %v303
      %v856 = vsel %vm798, %v854, 0.0
      %857 = vadd.xlane.f32.xlu0 %v856
      %v858 = vpop.xlane.xlu0 %857
      %v859 = vadd.f32 %v855, %v858
      %v860 = vpack.c.bf16 %v854, %v854
      %v862 = vsel %vm798, %v860, 0
      %vm864 = vcmask 1043456
      %v866 = vsel %vm864, %v797, 0
      %868 = vmatprep.subr.bf16.mxu0 0
      %869 = vmatpush1.bf16.msra.mxu0 %v866
      %870 = vmatprep.subr.bf16.mxu0 0
      %871 = vmatpush1.bf16.msra.mxu0 0
      %872 = vmatprep.subr.bf16.mxu0 0
      %873 = vmatpush1.bf16.msra.mxu0 0
      %874 = vmatprep.subr.bf16.mxu0 0
      %875 = vmatpush1.bf16.msra.mxu0 0
      %876 = vmatprep.subr.bf16.mxu0 0
      %877 = vmatpush1.bf16.msra.mxu0 0
      %878 = vmatprep.subr.bf16.mxu0 0
      %879 = vmatpush1.bf16.msra.mxu0 0
      %880 = vmatprep.subr.bf16.mxu0 0
      %881 = vmatpush1.bf16.msra.mxu0 0
      %882 = vmatprep.subr.bf16.mxu0 0
      %883 = vmatpush1.bf16.msra.mxu0 0
      %884 = vmatprep.subr.bf16.mxu0 0
      %885 = vmatpush1.bf16.msra.mxu0 0
      %886 = vmatprep.subr.bf16.mxu0 0
      %887 = vmatpush1.bf16.msra.mxu0 0
      %888 = vmatprep.subr.bf16.mxu0 0
      %889 = vmatpush1.bf16.msra.mxu0 0
      %890 = vmatprep.subr.bf16.mxu0 0
      %891 = vmatpush1.bf16.msra.mxu0 0
      %892 = vmatprep.subr.bf16.mxu0 0
      %893 = vmatpush1.bf16.msra.mxu0 0
      %894 = vmatprep.subr.bf16.mxu0 0
      %895 = vmatpush1.bf16.msra.mxu0 0
      %896 = vmatprep.subr.bf16.mxu0 0
      %897 = vmatpush1.bf16.msra.mxu0 0
      %898 = vmatprep.subr.bf16.mxu0 0
      %899 = vmatpush1.bf16.msra.mxu0 0
      %900 = vmatprep.mubr.bf16.mxu0 0
      %901 = vmatmul.mubr.bf16.gmra.mrb[0].mxu0 %v862
      %v902 = vpop.f32.mrb[0].mxu0
      %v903 = vadd.f32 0.0, %v902
      %v904 = vpop.f32.mrb[0].mxu0
      %v905 = vpop.f32.mrb[0].mxu0
      %v906 = vpop.f32.mrb[0].mxu0
      %907 = vdwg.mxu0
      %v908 = vmul.f32 %v851, %v307
      %v909 = vadd.f32 %v908, %v903
      %v911 = vunpack.c.l.b16 %v286
      %v912 = vpack.c.b16 %v911, %v911
      %913 = vrot.lane.b32.xlu0 %v912, 120
      %v914 = vpop.permute.xlu0 %913
      %v916 = vunpack.c.l.b16 %v794
      %v917 = vpack.c.b16 %v916, %v916
      %918 = vrot.lane.b32.xlu0 %v917, 120
      %v919 = vpop.permute.xlu0 %918
      %v921 = vsel %vm798, %v914, 0
      %v924 = vsel %vm798, %v919, 0
      %926 = vmatprep.subr.bf16.mxu0 0
      %927 = vmatpush1.bf16.xpose.msra.mxu0 %v924
      %928 = vmatprep.subr.bf16.mxu0 0
      %929 = vmatpush1.bf16.xpose.msra.mxu0 0
      %930 = vmatprep.subr.bf16.mxu0 0
      %931 = vmatpush1.bf16.xpose.msra.mxu0 0
      %932 = vmatprep.subr.bf16.mxu0 0
      %933 = vmatpush1.bf16.xpose.msra.mxu0 0
      %934 = vmatprep.subr.bf16.mxu0 0
      %935 = vmatpush1.bf16.xpose.msra.mxu0 0
      %936 = vmatprep.subr.bf16.mxu0 0
      %937 = vmatpush1.bf16.xpose.msra.mxu0 0
      %938 = vmatprep.subr.bf16.mxu0 0
      %939 = vmatpush1.bf16.xpose.msra.mxu0 0
      %940 = vmatprep.subr.bf16.mxu0 0
      %941 = vmatpush1.bf16.xpose.msra.mxu0 0
      %942 = vmatprep.subr.bf16.mxu0 0
      %943 = vmatpush1.bf16.xpose.msra.mxu0 0
      %944 = vmatprep.subr.bf16.mxu0 0
      %945 = vmatpush1.bf16.xpose.msra.mxu0 0
      %946 = vmatprep.subr.bf16.mxu0 0
      %947 = vmatpush1.bf16.xpose.msra.mxu0 0
      %948 = vmatprep.subr.bf16.mxu0 0
      %949 = vmatpush1.bf16.xpose.msra.mxu0 0
      %950 = vmatprep.subr.bf16.mxu0 0
      %951 = vmatpush1.bf16.xpose.msra.mxu0 0
      %952 = vmatprep.subr.bf16.mxu0 0
      %953 = vmatpush1.bf16.xpose.msra.mxu0 0
      %954 = vmatprep.subr.bf16.mxu0 0
      %955 = vmatpush1.bf16.xpose.msra.mxu0 0
      %956 = vmatprep.subr.bf16.mxu0 0
      %957 = vmatpush1.bf16.xpose.msra.mxu0 0
      %958 = vmatprep.mubr.bf16.mxu0 0
      %959 = vmatmul.mubr.bf16.gmra.mrb[0].mxu0 %v921
      %v960 = vpop.f32.mrb[0].mxu0
      %v961 = vadd.f32 %v292, %v960
      %v962 = vpop.f32.mrb[0].mxu0
      %v963 = vpop.f32.mrb[0].mxu0
      %v964 = vpop.f32.mrb[0].mxu0
      %965 = vdwg.mxu0
      %v966 = vsel %vm798, %v961, -inf
      %967 = vmax.xlane.f32.xlu0 %v966
      %v968 = vpop.xlane.xlu0 %967
      %v969 = vmax.f32 %v300, %v968
      %v970 = vsub.f32 %v300, %v969
      %v971 = vmul.f32 %v970, 1.442695
      %v972 = vpow.pop %v971
      %v973 = vsub.f32 %v961, %v969
      %v974 = vmul.f32 %v973, 1.442695
      %v975 = vpow.pop %v974
      %v976 = vmul.f32 %v972, %v304
      %v977 = vsel %vm798, %v975, 0.0
      %978 = vadd.xlane.f32.xlu0 %v977
      %v979 = vpop.xlane.xlu0 %978
      %v980 = vadd.f32 %v976, %v979
      %v981 = vpack.c.bf16 %v975, %v975
      %v983 = vunpack.c.l.b16 %v797
      %v984 = vpack.c.b16 %v983, %v983
      %985 = vrot.lane.b32.xlu0 %v984, 120
      %v986 = vpop.permute.xlu0 %985
      %v988 = vsel %vm798, %v981, 0
      %v991 = vsel %vm864, %v986, 0
      %993 = vmatprep.subr.bf16.mxu0 0
      %994 = vmatpush1.bf16.msra.mxu0 %v991
      %995 = vmatprep.subr.bf16.mxu0 0
      %996 = vmatpush1.bf16.msra.mxu0 0
      %997 = vmatprep.subr.bf16.mxu0 0
      %998 = vmatpush1.bf16.msra.mxu0 0
      %999 = vmatprep.subr.bf16.mxu0 0
      %1000 = vmatpush1.bf16.msra.mxu0 0
      %1001 = vmatprep.subr.bf16.mxu0 0
      %1002 = vmatpush1.bf16.msra.mxu0 0
      %1003 = vmatprep.subr.bf16.mxu0 0
      %1004 = vmatpush1.bf16.msra.mxu0 0
      %1005 = vmatprep.subr.bf16.mxu0 0
      %1006 = vmatpush1.bf16.msra.mxu0 0
      %1007 = vmatprep.subr.bf16.mxu0 0
      %1008 = vmatpush1.bf16.msra.mxu0 0
      %1009 = vmatprep.subr.bf16.mxu0 0
      %1010 = vmatpush1.bf16.msra.mxu0 0
      %1011 = vmatprep.subr.bf16.mxu0 0
      %1012 = vmatpush1.bf16.msra.mxu0 0
      %1013 = vmatprep.subr.bf16.mxu0 0
      %1014 = vmatpush1.bf16.msra.mxu0 0
      %1015 = vmatprep.subr.bf16.mxu0 0
      %1016 = vmatpush1.bf16.msra.mxu0 0
      %1017 = vmatprep.subr.bf16.mxu0 0
      %1018 = vmatpush1.bf16.msra.mxu0 0
      %1019 = vmatprep.subr.bf16.mxu0 0
      %1020 = vmatpush1.bf16.msra.mxu0 0
      %1021 = vmatprep.subr.bf16.mxu0 0
      %1022 = vmatpush1.bf16.msra.mxu0 0
      %1023 = vmatprep.subr.bf16.mxu0 0
      %1024 = vmatpush1.bf16.msra.mxu0 0
      %1025 = vmatprep.mubr.bf16.mxu0 0
      %1026 = vmatmul.mubr.bf16.gmra.mrb[0].mxu0 %v988
      %v1027 = vpop.f32.mrb[0].mxu0
      %v1028 = vadd.f32 0.0, %v1027
      %v1029 = vpop.f32.mrb[0].mxu0
      %v1030 = vpop.f32.mrb[0].mxu0
      %v1031 = vpop.f32.mrb[0].mxu0
      %1032 = vdwg.mxu0
      %v1033 = vmul.f32 %v972, %v308
      %v1034 = vadd.f32 %v1033, %v1028
      %1035 = vrot.lane.b32.xlu0 %v912, 112
      %v1036 = vpop.permute.xlu0 %1035
      %1037 = vrot.lane.b32.xlu0 %v917, 112
      %v1038 = vpop.permute.xlu0 %1037
      %v1040 = vsel %vm798, %v1036, 0
      %v1043 = vsel %vm798, %v1038, 0
      %1045 = vmatprep.subr.bf16.mxu0 0
      %1046 = vmatpush1.bf16.xpose.msra.mxu0 %v1043
      %1047 = vmatprep.subr.bf16.mxu0 0
      %1048 = vmatpush1.bf16.xpose.msra.mxu0 0
      %1049 = vmatprep.subr.bf16.mxu0 0
      %1050 = vmatpush1.bf16.xpose.msra.mxu0 0
      %1051 = vmatprep.subr.bf16.mxu0 0
      %1052 = vmatpush1.bf16.xpose.msra.mxu0 0
      %1053 = vmatprep.subr.bf16.mxu0 0
      %1054 = vmatpush1.bf16.xpose.msra.mxu0 0
      %1055 = vmatprep.subr.bf16.mxu0 0
      %1056 = vmatpush1.bf16.xpose.msra.mxu0 0
      %1057 = vmatprep.subr.bf16.mxu0 0
      %1058 = vmatpush1.bf16.xpose.msra.mxu0 0
      %1059 = vmatprep.subr.bf16.mxu0 0
      %1060 = vmatpush1.bf16.xpose.msra.mxu0 0
      %1061 = vmatprep.subr.bf16.mxu0 0
      %1062 = vmatpush1.bf16.xpose.msra.mxu0 0
      %1063 = vmatprep.subr.bf16.mxu0 0
      %1064 = vmatpush1.bf16.xpose.msra.mxu0 0
      %1065 = vmatprep.subr.bf16.mxu0 0
      %1066 = vmatpush1.bf16.xpose.msra.mxu0 0
      %1067 = vmatprep.subr.bf16.mxu0 0
      %1068 = vmatpush1.bf16.xpose.msra.mxu0 0
      %1069 = vmatprep.subr.bf16.mxu0 0
      %1070 = vmatpush1.bf16.xpose.msra.mxu0 0
      %1071 = vmatprep.subr.bf16.mxu0 0
      %1072 = vmatpush1.bf16.xpose.msra.mxu0 0
      %1073 = vmatprep.subr.bf16.mxu0 0
      %1074 = vmatpush1.bf16.xpose.msra.mxu0 0
      %1075 = vmatprep.subr.bf16.mxu0 0
      %1076 = vmatpush1.bf16.xpose.msra.mxu0 0
      %1077 = vmatprep.mubr.bf16.mxu0 0
      %1078 = vmatmul.mubr.bf16.gmra.mrb[0].mxu0 %v1040
      %v1079 = vpop.f32.mrb[0].mxu0
      %v1080 = vadd.f32 %v292, %v1079
      %v1081 = vpop.f32.mrb[0].mxu0
      %v1082 = vpop.f32.mrb[0].mxu0
      %v1083 = vpop.f32.mrb[0].mxu0
      %1084 = vdwg.mxu0
      %v1085 = vsel %vm798, %v1080, -inf
      %1086 = vmax.xlane.f32.xlu0 %v1085
      %v1087 = vpop.xlane.xlu0 %1086
      %v1088 = vmax.f32 %v301, %v1087
      %v1089 = vsub.f32 %v301, %v1088
      %v1090 = vmul.f32 %v1089, 1.442695
      %v1091 = vpow.pop %v1090
      %v1092 = vsub.f32 %v1080, %v1088
      %v1093 = vmul.f32 %v1092, 1.442695
      %v1094 = vpow.pop %v1093
      %v1095 = vmul.f32 %v1091, %v305
      %v1096 = vsel %vm798, %v1094, 0.0
      %1097 = vadd.xlane.f32.xlu0 %v1096
      %v1098 = vpop.xlane.xlu0 %1097
      %v1099 = vadd.f32 %v1095, %v1098
      %v1100 = vpack.c.bf16 %v1094, %v1094
      %1101 = vrot.lane.b32.xlu0 %v984, 112
      %v1102 = vpop.permute.xlu0 %1101
      %v1104 = vsel %vm798, %v1100, 0
      %v1107 = vsel %vm864, %v1102, 0
      %1109 = vmatprep.subr.bf16.mxu0 0
      %1110 = vmatpush1.bf16.msra.mxu0 %v1107
      %1111 = vmatprep.subr.bf16.mxu0 0
      %1112 = vmatpush1.bf16.msra.mxu0 0
      %1113 = vmatprep.subr.bf16.mxu0 0
      %1114 = vmatpush1.bf16.msra.mxu0 0
      %1115 = vmatprep.subr.bf16.mxu0 0
      %1116 = vmatpush1.bf16.msra.mxu0 0
      %1117 = vmatprep.subr.bf16.mxu0 0
      %1118 = vmatpush1.bf16.msra.mxu0 0
      %1119 = vmatprep.subr.bf16.mxu0 0
      %1120 = vmatpush1.bf16.msra.mxu0 0
      %1121 = vmatprep.subr.bf16.mxu0 0
      %1122 = vmatpush1.bf16.msra.mxu0 0
      %1123 = vmatprep.subr.bf16.mxu0 0
      %1124 = vmatpush1.bf16.msra.mxu0 0
      %1125 = vmatprep.subr.bf16.mxu0 0
      %1126 = vmatpush1.bf16.msra.mxu0 0
      %1127 = vmatprep.subr.bf16.mxu0 0
      %1128 = vmatpush1.bf16.msra.mxu0 0
      %1129 = vmatprep.subr.bf16.mxu0 0
      %1130 = vmatpush1.bf16.msra.mxu0 0
      %1131 = vmatprep.subr.bf16.mxu0 0
      %1132 = vmatpush1.bf16.msra.mxu0 0
      %1133 = vmatprep.subr.bf16.mxu0 0
      %1134 = vmatpush1.bf16.msra.mxu0 0
      %1135 = vmatprep.subr.bf16.mxu0 0
      %1136 = vmatpush1.bf16.msra.mxu0 0
      %1137 = vmatprep.subr.bf16.mxu0 0
      %1138 = vmatpush1.bf16.msra.mxu0 0
      %1139 = vmatprep.subr.bf16.mxu0 0
      %1140 = vmatpush1.bf16.msra.mxu0 0
      %1141 = vmatprep.mubr.bf16.mxu0 0
      %1142 = vmatmul.mubr.bf16.gmra.mrb[0].mxu0 %v1104
      %v1143 = vpop.f32.mrb[0].mxu0
      %v1144 = vadd.f32 0.0, %v1143
      %v1145 = vpop.f32.mrb[0].mxu0
      %v1146 = vpop.f32.mrb[0].mxu0
      %v1147 = vpop.f32.mrb[0].mxu0
      %1148 = vdwg.mxu0
      %v1149 = vmul.f32 %v1091, %v309
      %v1150 = vadd.f32 %v1149, %v1144
      %1151 = vrot.lane.b32.xlu0 %v912, 104
      %v1152 = vpop.permute.xlu0 %1151
      %1153 = vrot.lane.b32.xlu0 %v917, 104
      %v1154 = vpop.permute.xlu0 %1153
      %v1156 = vsel %vm798, %v1152, 0
      %v1159 = vsel %vm798, %v1154, 0
      %1161 = vmatprep.subr.bf16.mxu0 0
      %1162 = vmatpush1.bf16.xpose.msra.mxu0 %v1159
      %1163 = vmatprep.subr.bf16.mxu0 0
      %1164 = vmatpush1.bf16.xpose.msra.mxu0 0
      %1165 = vmatprep.subr.bf16.mxu0 0
      %1166 = vmatpush1.bf16.xpose.msra.mxu0 0
      %1167 = vmatprep.subr.bf16.mxu0 0
      %1168 = vmatpush1.bf16.xpose.msra.mxu0 0
      %1169 = vmatprep.subr.bf16.mxu0 0
      %1170 = vmatpush1.bf16.xpose.msra.mxu0 0
      %1171 = vmatprep.subr.bf16.mxu0 0
      %1172 = vmatpush1.bf16.xpose.msra.mxu0 0
      %1173 = vmatprep.subr.bf16.mxu0 0
      %1174 = vmatpush1.bf16.xpose.msra.mxu0 0
      %1175 = vmatprep.subr.bf16.mxu0 0
      %1176 = vmatpush1.bf16.xpose.msra.mxu0 0
      %1177 = vmatprep.subr.bf16.mxu0 0
      %1178 = vmatpush1.bf16.xpose.msra.mxu0 0
      %1179 = vmatprep.subr.bf16.mxu0 0
      %1180 = vmatpush1.bf16.xpose.msra.mxu0 0
      %1181 = vmatprep.subr.bf16.mxu0 0
      %1182 = vmatpush1.bf16.xpose.msra.mxu0 0
      %1183 = vmatprep.subr.bf16.mxu0 0
      %1184 = vmatpush1.bf16.xpose.msra.mxu0 0
      %1185 = vmatprep.subr.bf16.mxu0 0
      %1186 = vmatpush1.bf16.xpose.msra.mxu0 0
      %1187 = vmatprep.subr.bf16.mxu0 0
      %1188 = vmatpush1.bf16.xpose.msra.mxu0 0
      %1189 = vmatprep.subr.bf16.mxu0 0
      %1190 = vmatpush1.bf16.xpose.msra.mxu0 0
      %1191 = vmatprep.subr.bf16.mxu0 0
      %1192 = vmatpush1.bf16.xpose.msra.mxu0 0
      %1193 = vmatprep.mubr.bf16.mxu0 0
      %1194 = vmatmul.mubr.bf16.gmra.mrb[0].mxu0 %v1156
      %v1195 = vpop.f32.mrb[0].mxu0
      %v1196 = vadd.f32 %v292, %v1195
      %v1197 = vpop.f32.mrb[0].mxu0
      %v1198 = vpop.f32.mrb[0].mxu0
      %v1199 = vpop.f32.mrb[0].mxu0
      %1200 = vdwg.mxu0
      %v1201 = vsel %vm798, %v1196, -inf
      %1202 = vmax.xlane.f32.xlu0 %v1201
      %v1203 = vpop.xlane.xlu0 %1202
      %v1204 = vmax.f32 %v302, %v1203
      %v1205 = vsub.f32 %v302, %v1204
      %v1206 = vmul.f32 %v1205, 1.442695
      %v1207 = vpow.pop %v1206
      %v1208 = vsub.f32 %v1196, %v1204
      %v1209 = vmul.f32 %v1208, 1.442695
      %v1210 = vpow.pop %v1209
      %v1211 = vmul.f32 %v1207, %v306
      %v1212 = vsel %vm798, %v1210, 0.0
      %1213 = vadd.xlane.f32.xlu0 %v1212
      %v1214 = vpop.xlane.xlu0 %1213
      %v1215 = vadd.f32 %v1211, %v1214
      %v1216 = vpack.c.bf16 %v1210, %v1210
      %1217 = vrot.lane.b32.xlu0 %v984, 104
      %v1218 = vpop.permute.xlu0 %1217
      %v1220 = vsel %vm798, %v1216, 0
      %v1223 = vsel %vm864, %v1218, 0
      %1225 = vmatprep.subr.bf16.mxu0 0
      %1226 = vmatpush1.bf16.msra.mxu0 %v1223
      %1227 = vmatprep.subr.bf16.mxu0 0
      %1228 = vmatpush1.bf16.msra.mxu0 0
      %1229 = vmatprep.subr.bf16.mxu0 0
      %1230 = vmatpush1.bf16.msra.mxu0 0
      %1231 = vmatprep.subr.bf16.mxu0 0
      %1232 = vmatpush1.bf16.msra.mxu0 0
      %1233 = vmatprep.subr.bf16.mxu0 0
      %1234 = vmatpush1.bf16.msra.mxu0 0
      %1235 = vmatprep.subr.bf16.mxu0 0
      %1236 = vmatpush1.bf16.msra.mxu0 0
      %1237 = vmatprep.subr.bf16.mxu0 0
      %1238 = vmatpush1.bf16.msra.mxu0 0
      %1239 = vmatprep.subr.bf16.mxu0 0
      %1240 = vmatpush1.bf16.msra.mxu0 0
      %1241 = vmatprep.subr.bf16.mxu0 0
      %1242 = vmatpush1.bf16.msra.mxu0 0
      %1243 = vmatprep.subr.bf16.mxu0 0
      %1244 = vmatpush1.bf16.msra.mxu0 0
      %1245 = vmatprep.subr.bf16.mxu0 0
      %1246 = vmatpush1.bf16.msra.mxu0 0
      %1247 = vmatprep.subr.bf16.mxu0 0
      %1248 = vmatpush1.bf16.msra.mxu0 0
      %1249 = vmatprep.subr.bf16.mxu0 0
      %1250 = vmatpush1.bf16.msra.mxu0 0
      %1251 = vmatprep.subr.bf16.mxu0 0
      %1252 = vmatpush1.bf16.msra.mxu0 0
      %1253 = vmatprep.subr.bf16.mxu0 0
      %1254 = vmatpush1.bf16.msra.mxu0 0
      %1255 = vmatprep.subr.bf16.mxu0 0
      %1256 = vmatpush1.bf16.msra.mxu0 0
      %1257 = vmatprep.mubr.bf16.mxu0 0
      %1258 = vmatmul.mubr.bf16.gmra.mrb[0].mxu0 %v1220
      %v1259 = vpop.f32.mrb[0].mxu0
      %v1260 = vadd.f32 0.0, %v1259
      %v1261 = vpop.f32.mrb[0].mxu0
      %v1262 = vpop.f32.mrb[0].mxu0
      %v1263 = vpop.f32.mrb[0].mxu0
      %1264 = vdwg.mxu0
      %v1265 = vmul.f32 %v1207, %v310
      %v1266 = vadd.f32 %v1265, %v1260
      %v1267 = vrcp.pop %v859
      %v1268 = vmul.f32 %v909, %v1267
      %v1269 = vrcp.pop %v980
      %v1270 = vmul.f32 %v1034, %v1269
      %v1271 = vrcp.pop %v1099
      %v1272 = vmul.f32 %v1150, %v1271
      %v1273 = vrcp.pop %v1215
      %v1274 = vmul.f32 %v1266, %v1273
      %1276 = vrot.lane.b32.xlu0 %v1270, 8
      %v1277 = vpop.permute.xlu0 %1276
      %1280 = vrot.lane.b32.xlu0 %v1272, 16
      %v1281 = vpop.permute.xlu0 %1280
      %1284 = vrot.lane.b32.xlu0 %v1274, 24
      %v1285 = vpop.permute.xlu0 %1284
      %v1287 = vsel %vm798, %v1268, %v1277
      %vm1288 = vcmask 130048
      %v1289 = vsel %vm1288, %v1287, %v1281
      %vm1290 = vcmask 195584
      %v1291 = vsel %vm1290, %v1289, %v1285
      %v1292 = vpack.c.bf16 %v1291, %v1291
      %vm1293 = vcmask 257024
      %1294 = vst.msk [vmem:[%s284] sm:$0xf] %vm1293, %v1292
      %p1295 = scmp.lt.s32.totalorder %s19, 1
      %s1296 = scalar_select %p1295, %s19, 1
      %p1297 = scmp.lt.s32.totalorder %s21, 0
      %s1298 = scalar_select %p1297, %s21, 0
      %p1299 = scmp.lt.s32.totalorder %s20, 0
      %s1300 = scalar_select %p1299, %s20, 0
      %s1301 = sadd.s32 %s1300, %s1298
      %s1302 = sadd.s32 %s1301, %s1296
      %s1303 = smul.addr %s1302, 4
      %s1304 = scalar_lea.vmem %s3, %s1303
      // Predicated region
      $region40: #{causal_self_attention.4} parent=31 // pred_check
        %p1305 = pneg %p141
      $region41: #{causal_self_attention.4} parent=31 // pred_check_branch
        %1307 = sbr.rel (%p1305) target = $region43
      $region42: #{causal_self_attention.4} parent=31 // pred_region
        _
      $region43: #{causal_self_attention.4} parent=31 // pred_fallthru
        _
    $region32: #{causal_self_attention.4} parent=5 // pred_fallthru
      _
    %p1308 = scmp.le.s32.totalorder 2, %s9
    // Predicated region
    $region44: #{causal_self_attention.4} parent=5 // pred_check
      %p1309 = pneg %p1308
    $region45: #{causal_self_attention.4} parent=5 // pred_check_branch
      %1311 = sbr.rel (%p1309) target = $region47
    $region46: #{causal_self_attention.4} parent=5 // pred_region
      %s1312 = ssub.s32 %s9, 2
      // Predicated region
      $region48: #{causal_self_attention.4} parent=46 // pred_check
        %p1313 = pneg %p147
      $region49: #{causal_self_attention.4} parent=46 // pred_check_branch
        %1315 = sbr.rel (%p1313) target = $region51
      $region50: #{causal_self_attention.4} parent=46 // pred_region
        %p1316 = scmp.lt.s32.totalorder %s22, 1
        %s1317 = scalar_select %p1316, %s22, 1
        %p1318 = scmp.lt.s32.totalorder %s24, 0
        %s1319 = scalar_select %p1318, %s24, 0
        %p1320 = scmp.lt.s32.totalorder %s23, 0
        %s1321 = scalar_select %p1320, %s23, 0
        %s1322 = sadd.s32 %s1321, %s1319
        %s1323 = sadd.s32 %s1322, %s1317
        %s1324 = smul.addr %s1323, 4
        %s1325 = scalar_lea.vmem %s3, %s1324
      $region51: #{causal_self_attention.4} parent=46 // pred_fallthru
        _
    $region47: #{causal_self_attention.4} parent=5 // pred_fallthru
      _
  $region6: #{causal_self_attention.4} parent=0 // loop_footer
    %s13 = sadd.s32 1, %s9
  $region7: #{causal_self_attention.4} parent=0 // loop_footer_branch
    %8 = sbr.rel target = $region3
  $region8: #{causal_self_attention.4} parent=0 // loop_exit
    _

</llo_original>
